<compile_context>
chip_gen: v6e
topology: v6e:2x2x1
jax: 0.10.0
libtpu: 0.0.40
codegen_flags: <defaults>
</compile_context>

<pallas_src>
import jax
import jax.numpy as jnp
from jax.experimental import pallas as pl
from jax.experimental.pallas import tpu as pltpu

LN_EPS = 1e-5  # PyTorch nn.LayerNorm default eps


def actor_kernel(s_ref,               # (TILE_B, 128) f32  (cast to bf16 in-kernel)
                 w2_ref, b2_ref,      # (128, 256) bf16, (1, 256) f32
                 g2_ref, be2_ref,     # (1, 256) f32, (1, 256) f32
                 w3_ref, b3_ref,      # (256, A) bf16, (1, A) f32
                 o_ref):              # (TILE_B, A) f32
    # x = relu(LayerNorm(states @ W2 + b2)) -- bf16 MXU inputs, f32 accumulate,
    # f32 elementwise (important on v5e: no bf16 VPU/EUP path).
    s_bf16 = s_ref[...].astype(jnp.bfloat16)       # cheap VPU cast, hidden under MXU
    h = jnp.dot(s_bf16, w2_ref[...],
                preferred_element_type=jnp.float32) + b2_ref[...]

    # Single-pass LayerNorm statistics: var = E[h^2] - E[h]^2 (biased, f32).
    m1 = jnp.mean(h, axis=-1, keepdims=True)
    m2 = jnp.mean(h * h, axis=-1, keepdims=True)
    var = jnp.maximum(m2 - m1 * m1, 0.0)
    hn = (h - m1) * jax.lax.rsqrt(var + LN_EPS) * g2_ref[...] + be2_ref[...]
    x = jnp.maximum(hn, 0.0)

    # tanh(x @ W3 + b3) -- bf16 MXU inputs, f32 accumulate.
    y = jnp.dot(x.astype(jnp.bfloat16), w3_ref[...],
                preferred_element_type=jnp.float32) + b3_ref[...]
    o_ref[...] = jnp.tanh(y)


def _round_up(x, m):
    return ((x + m - 1) // m) * m


def actor_forward(states, params, tile_b=1024):
    """states: (B, 128) float32.  Returns (B, action_space) float32."""
    w2, b2, g2, be2, w3, b3 = params
    B, S = states.shape
    A = w3.shape[1]
    assert S == 128, "reference forward requires state_space == 128"

    # Tile sizing:
    #   * never larger than the batch,
    #   * for B > 256 cap so the grid has >= 2 steps (lets v7x's two TensorCores
    #     both take "parallel" steps),
    #   * multiple of 8 sublanes for the f32 input block unless it is the full array.
    tile_b = min(tile_b, B)
    if B > 256:
        tile_b = min(tile_b, _round_up(pl.cdiv(B, 2), 8))
    if tile_b < B:
        tile_b = max(8, (tile_b // 8) * 8)

    grid = (pl.cdiv(B, tile_b),)   # last block may overhang; no pad, no post-slice

    weight_bytes = (w2.size * 2 + b2.size * 4 + g2.size * 4 + be2.size * 4
                    + w3.size * 2 + b3.size * 4)
    cost = pl.CostEstimate(
        flops=2 * B * (S * 256 + 256 * A),
        transcendentals=B * (A + 1),                      # tanh per output + rsqrt per row
        bytes_accessed=B * S * 4 + B * A * 4 + weight_bytes,
    )

    out = pl.pallas_call(
        actor_kernel,
        out_shape=jax.ShapeDtypeStruct((B, A), jnp.float32),
        grid=grid,
        in_specs=[
            pl.BlockSpec((tile_b, S), lambda i: (i, 0)),     # states tile (pipelined)
            pl.BlockSpec((S, 256), lambda i: (0, 0)),        # w2  (VMEM-resident)
            pl.BlockSpec((1, 256), lambda i: (0, 0)),        # b2
            pl.BlockSpec((1, 256), lambda i: (0, 0)),        # gamma2
            pl.BlockSpec((1, 256), lambda i: (0, 0)),        # beta2
            pl.BlockSpec((256, A), lambda i: (0, 0)),        # w3
            pl.BlockSpec((1, A), lambda i: (0, 0)),          # b3
        ],
        out_specs=pl.BlockSpec((tile_b, A), lambda i: (i, 0)),
        compiler_params=pltpu.CompilerParams(
            dimension_semantics=("parallel",)),
        cost_estimate=cost,
    )(states, w2, b2, g2, be2, w3, b3)

    return out


def init_params(key, state_space, action_space):
    """Only the parameters that reach the output: l2 / n2 / l3.

    The module's l1 / n1 parameters are dead in the reference forward (their
    result is overwritten before use), so they are intentionally not created
    here and never DMA'd into the kernel.
    """
    assert state_space == 128
    k = jax.random.split(key, 4)
    w2 = (jax.random.normal(k[0], (128, 256), jnp.float32)
          * (1.0 / jnp.sqrt(128.0))).astype(jnp.bfloat16)
    b2 = jax.random.normal(k[1], (1, 256), jnp.float32) * 0.01
    g2 = jnp.ones((1, 256), jnp.float32)
    be2 = jnp.zeros((1, 256), jnp.float32)
    w3 = (jax.random.normal(k[2], (256, action_space), jnp.float32)
          * (1.0 / jnp.sqrt(256.0))).astype(jnp.bfloat16)
    b3 = jax.random.normal(k[3], (1, action_space), jnp.float32) * 0.01
    return (w2, b2, g2, be2, w3, b3)


def actor_reference_bf16(states, params):
    """Plain-JAX reference mirroring the kernel's exact math (bf16-in dots,
    f32 accumulate, single-pass LN stats)."""
    w2, b2, g2, be2, w3, b3 = params
    s = states.astype(jnp.bfloat16)
    h = jnp.dot(s, w2, preferred_element_type=jnp.float32) + b2
    m1 = jnp.mean(h, axis=-1, keepdims=True)
    m2 = jnp.mean(h * h, axis=-1, keepdims=True)
    var = jnp.maximum(m2 - m1 * m1, 0.0)
    x = jax.nn.relu((h - m1) * jax.lax.rsqrt(var + LN_EPS) * g2 + be2)
    y = jnp.dot(x.astype(jnp.bfloat16), w3, preferred_element_type=jnp.float32) + b3
    return jnp.tanh(y)


def actor_reference_f32(states, params):
    """Full-f32 reference with the original module semantics (sanity check)."""
    w2, b2, g2, be2, w3, b3 = params
    h = states @ w2.astype(jnp.float32) + b2
    mu = jnp.mean(h, axis=-1, keepdims=True)
    var = jnp.mean((h - mu) ** 2, axis=-1, keepdims=True)
    x = jax.nn.relu((h - mu) / jnp.sqrt(var + LN_EPS) * g2 + be2)
    return jnp.tanh(x @ w3.astype(jnp.float32) + b3)


if __name__ == "__main__":
    batch = 200          # NOT a multiple of tile_b -> exercises the overhanging last block
    state_space = 128    # required for the reference forward to be well-typed
    action_space = 8

    key = jax.random.PRNGKey(0)
    k_s, k_p = jax.random.split(key)
    states = jax.random.normal(k_s, (batch, state_space), jnp.float32)
    params = init_params(k_p, state_space, action_space)

    # tile_b=128 -> grid=(2,), second block overhangs by 56 rows (no pad / no slice).
    out = actor_forward(states, params, tile_b=128)
    out = jax.block_until_ready(out)
    assert out.shape == (batch, action_space), out.shape
    assert bool(jnp.all(jnp.isfinite(out))), "non-finite values in valid output rows"

    # Exact-math check against a reference with identical bf16-in / f32-acc math.
    ref_bf16 = actor_reference_bf16(states, params)
    assert jnp.allclose(out, ref_bf16, atol=2e-4, rtol=2e-4), \
        "mismatch vs bf16-mirrored JAX reference"

    # Looser semantic check against the pure-f32 module math (bf16 rounding slack).
    ref_f32 = actor_reference_f32(states, params)
    assert jnp.allclose(out, ref_f32, atol=6e-2), "mismatch vs f32 JAX reference"

    # Also exercise the default tile sizing path (single full-array block here).
    out2 = jax.block_until_ready(actor_forward(states, params))
    assert jnp.allclose(out2, ref_bf16, atol=2e-4, rtol=2e-4)

    print("KERNEL_OK")
</pallas_src>

<mosaic_0001>
module attributes {stable_mosaic.version = 11 : i64} {
  func.func @actor_kernel(%arg0: i32, %arg1: memref<128x128xf32, #tpu.memory_space<vmem>>, %arg2: memref<128x256xbf16, #tpu.memory_space<vmem>>, %arg3: memref<1x256xf32, #tpu.memory_space<vmem>>, %arg4: memref<1x256xf32, #tpu.memory_space<vmem>>, %arg5: memref<1x256xf32, #tpu.memory_space<vmem>>, %arg6: memref<256x8xbf16, #tpu.memory_space<vmem>>, %arg7: memref<1x8xf32, #tpu.memory_space<vmem>>, %arg8: memref<128x8xf32, #tpu.memory_space<vmem>>) attributes {dimension_semantics = [#tpu.dimension_semantics<parallel>], iteration_bounds = array<i64: 2>, scalar_prefetch = 0 : i64, scratch_operands = 0 : i64, tpu.core_type = #tpu.core_type<tc>, window_params = [{transform_indices = @transform_0, window_bounds = array<i64: 128, 128>}, {pipeline_mode = #tpu.pipeline_mode<synchronous>, transform_indices = @transform_1, window_bounds = array<i64: 128, 256>}, {pipeline_mode = #tpu.pipeline_mode<synchronous>, transform_indices = @transform_2, window_bounds = array<i64: 1, 256>}, {pipeline_mode = #tpu.pipeline_mode<synchronous>, transform_indices = @transform_3, window_bounds = array<i64: 1, 256>}, {pipeline_mode = #tpu.pipeline_mode<synchronous>, transform_indices = @transform_4, window_bounds = array<i64: 1, 256>}, {pipeline_mode = #tpu.pipeline_mode<synchronous>, transform_indices = @transform_5, window_bounds = array<i64: 256, 8>}, {pipeline_mode = #tpu.pipeline_mode<synchronous>, transform_indices = @transform_6, window_bounds = array<i64: 1, 8>}, {transform_indices = @transform_7, window_bounds = array<i64: 128, 8>}]} {
    %c0 = arith.constant 0 : index
    %c0_0 = arith.constant 0 : index
    %0 = vector.load %arg1[%c0, %c0_0] : memref<128x128xf32, #tpu.memory_space<vmem>>, vector<128x128xf32>
    %1 = arith.truncf %0 : vector<128x128xf32> to vector<128x128xbf16>
    %c0_1 = arith.constant 0 : index
    %c0_2 = arith.constant 0 : index
    %2 = vector.load %arg2[%c0_1, %c0_2] : memref<128x256xbf16, #tpu.memory_space<vmem>>, vector<128x256xbf16>
    %cst = arith.constant dense<0.000000e+00> : vector<128x256xf32>
    %3 = tpu.matmul %1, %2, %cst {dimension_numbers = #tpu.dot_dimension_numbers<[1], [0], [0], [1], [0, 0, 1, 1], [], []>} : vector<128x128xbf16>, vector<128x256xbf16>, vector<128x256xf32> -> vector<128x256xf32>
    %c0_3 = arith.constant 0 : index
    %c0_4 = arith.constant 0 : index
    %4 = vector.load %arg3[%c0_3, %c0_4] : memref<1x256xf32, #tpu.memory_space<vmem>>, vector<1x256xf32>
    %5 = vector.broadcast %4 : vector<1x256xf32> to vector<128x256xf32>
    %6 = arith.addf %3, %5 : vector<128x256xf32>
    %cst_5 = arith.constant dense<0.000000e+00> : vector<128xf32>
    %7 = vector.multi_reduction <add>, %6, %cst_5 [1] : vector<128x256xf32> to vector<128xf32>
    %8 = vector.shape_cast %7 : vector<128xf32> to vector<128x1xf32>
    %cst_6 = arith.constant 2.560000e+02 : f32
    %9 = vector.broadcast %cst_6 : f32 to vector<128x1xf32>
    %10 = arith.divf %8, %9 : vector<128x1xf32>
    %11 = arith.mulf %6, %6 : vector<128x256xf32>
    %cst_7 = arith.constant dense<0.000000e+00> : vector<128xf32>
    %12 = vector.multi_reduction <add>, %11, %cst_7 [1] : vector<128x256xf32> to vector<128xf32>
    %13 = vector.shape_cast %12 : vector<128xf32> to vector<128x1xf32>
    %cst_8 = arith.constant 2.560000e+02 : f32
    %14 = vector.broadcast %cst_8 : f32 to vector<128x1xf32>
    %15 = arith.divf %13, %14 : vector<128x1xf32>
    %16 = arith.mulf %10, %10 : vector<128x1xf32>
    %17 = arith.subf %15, %16 : vector<128x1xf32>
    %cst_9 = arith.constant 0.000000e+00 : f32
    %18 = vector.broadcast %cst_9 : f32 to vector<128x1xf32>
    %19 = arith.maximumf %17, %18 : vector<128x1xf32>
    %20 = vector.broadcast %10 : vector<128x1xf32> to vector<128x256xf32>
    %21 = arith.subf %6, %20 : vector<128x256xf32>
    %cst_10 = arith.constant 9.99999974E-6 : f32
    %22 = vector.broadcast %cst_10 : f32 to vector<128x1xf32>
    %23 = arith.addf %19, %22 : vector<128x1xf32>
    %24 = math.rsqrt %23 : vector<128x1xf32>
    %25 = vector.broadcast %24 : vector<128x1xf32> to vector<128x256xf32>
    %26 = arith.mulf %21, %25 : vector<128x256xf32>
    %c0_11 = arith.constant 0 : index
    %c0_12 = arith.constant 0 : index
    %27 = vector.load %arg4[%c0_11, %c0_12] : memref<1x256xf32, #tpu.memory_space<vmem>>, vector<1x256xf32>
    %28 = vector.broadcast %27 : vector<1x256xf32> to vector<128x256xf32>
    %29 = arith.mulf %26, %28 : vector<128x256xf32>
    %c0_13 = arith.constant 0 : index
    %c0_14 = arith.constant 0 : index
    %30 = vector.load %arg5[%c0_13, %c0_14] : memref<1x256xf32, #tpu.memory_space<vmem>>, vector<1x256xf32>
    %31 = vector.broadcast %30 : vector<1x256xf32> to vector<128x256xf32>
    %32 = arith.addf %29, %31 : vector<128x256xf32>
    %cst_15 = arith.constant 0.000000e+00 : f32
    %33 = vector.broadcast %cst_15 : f32 to vector<128x256xf32>
    %34 = arith.maximumf %32, %33 : vector<128x256xf32>
    %35 = arith.truncf %34 : vector<128x256xf32> to vector<128x256xbf16>
    %c0_16 = arith.constant 0 : index
    %c0_17 = arith.constant 0 : index
    %36 = vector.load %arg6[%c0_16, %c0_17] : memref<256x8xbf16, #tpu.memory_space<vmem>>, vector<256x8xbf16>
    %cst_18 = arith.constant dense<0.000000e+00> : vector<128x8xf32>
    %37 = tpu.matmul %35, %36, %cst_18 {dimension_numbers = #tpu.dot_dimension_numbers<[1], [0], [0], [1], [0, 0, 1, 1], [], []>} : vector<128x256xbf16>, vector<256x8xbf16>, vector<128x8xf32> -> vector<128x8xf32>
    %c0_19 = arith.constant 0 : index
    %c0_20 = arith.constant 0 : index
    %38 = vector.load %arg7[%c0_19, %c0_20] : memref<1x8xf32, #tpu.memory_space<vmem>>, vector<1x8xf32>
    %39 = vector.broadcast %38 : vector<1x8xf32> to vector<128x8xf32>
    %40 = arith.addf %37, %39 : vector<128x8xf32>
    %41 = math.tanh %40 : vector<128x8xf32>
    %c0_21 = arith.constant 0 : index
    %c0_22 = arith.constant 0 : index
    %42 = vector.load %arg8[%c0_21, %c0_22] : memref<128x8xf32, #tpu.memory_space<vmem>>, vector<128x8xf32>
    tpu.vector_store %arg8[%c0_21, %c0_22], %41 {strides = array<i32>} : memref<128x8xf32, #tpu.memory_space<vmem>>, vector<128x8xf32>,
    return
  }
  func.func @transform_0(%arg0: i32) -> (i32, i32) {
    %c0_i32 = arith.constant 0 : i32
    %c0_i32_0 = arith.constant 0 : i32
    return %arg0, %c0_i32 : i32, i32
  }
  func.func @transform_1(%arg0: i32) -> (i32, i32) {
    %c0_i32 = arith.constant 0 : i32
    %c0_i32_0 = arith.constant 0 : i32
    %c0_i32_1 = arith.constant 0 : i32
    return %c0_i32, %c0_i32_0 : i32, i32
  }
  func.func @transform_2(%arg0: i32) -> (i32, i32) {
    %c0_i32 = arith.constant 0 : i32
    %c0_i32_0 = arith.constant 0 : i32
    %c0_i32_1 = arith.constant 0 : i32
    return %c0_i32, %c0_i32_0 : i32, i32
  }
  func.func @transform_3(%arg0: i32) -> (i32, i32) {
    %c0_i32 = arith.constant 0 : i32
    %c0_i32_0 = arith.constant 0 : i32
    %c0_i32_1 = arith.constant 0 : i32
    return %c0_i32, %c0_i32_0 : i32, i32
  }
  func.func @transform_4(%arg0: i32) -> (i32, i32) {
    %c0_i32 = arith.constant 0 : i32
    %c0_i32_0 = arith.constant 0 : i32
    %c0_i32_1 = arith.constant 0 : i32
    return %c0_i32, %c0_i32_0 : i32, i32
  }
  func.func @transform_5(%arg0: i32) -> (i32, i32) {
    %c0_i32 = arith.constant 0 : i32
    %c0_i32_0 = arith.constant 0 : i32
    %c0_i32_1 = arith.constant 0 : i32
    return %c0_i32, %c0_i32_0 : i32, i32
  }
  func.func @transform_6(%arg0: i32) -> (i32, i32) {
    %c0_i32 = arith.constant 0 : i32
    %c0_i32_0 = arith.constant 0 : i32
    %c0_i32_1 = arith.constant 0 : i32
    return %c0_i32, %c0_i32_0 : i32, i32
  }
  func.func @transform_7(%arg0: i32) -> (i32, i32) {
    %c0_i32 = arith.constant 0 : i32
    %c0_i32_0 = arith.constant 0 : i32
    return %arg0, %c0_i32 : i32, i32
  }
}

</mosaic_0001>

<llo_original>
// kernel: tpu_custom_call.1
$region0: #{tpu_custom_call.1}
  #allocation0 [shape = 'u32[]', space=smem, size = 0x4, offset = 0x4, fixed_abs, tag = 'smem constant byte address 0x4 - core index']
  #allocation1 [shape = 'u32[144,128]{1,0:T(1,128)}', space=vmem, size = 0x12000, scoped, tag = 'internal scratch']
  %s0 = inlined_call_operand.hbm [shape: f32[200,128], index: 0, kind: input, shape index: {}]
  %s1 = inlined_call_operand.vmem [shape: bf16[128,256], index: 1, kind: input, shape index: {}]
  %s2 = inlined_call_operand.vmem [shape: f32[1,256], index: 2, kind: input, shape index: {}]
  %s3 = inlined_call_operand.vmem [shape: f32[1,256], index: 3, kind: input, shape index: {}]
  %s4 = inlined_call_operand.vmem [shape: f32[1,256], index: 4, kind: input, shape index: {}]
  %s5 = inlined_call_operand.vmem [shape: bf16[256,8], index: 5, kind: input, shape index: {}]
  %s6 = inlined_call_operand.vmem [shape: f32[1,8], index: 6, kind: input, shape index: {}]
  %s7 = inlined_call_operand.vmem [shape: f32[200,8], index: 7, kind: output, shape index: {}]
  %s8 = sld [smem:[#allocation0]]
  $region113: #{tpu_custom_call.1} parent=0
    _
  %s10 = ssub.s32 1, %s8
  %s11 = scalar_select 0, %s10, %s8
  $region1: #{tpu_custom_call.1} parent=0
    #allocation2 [shape = 'u8[131072]{0}', space=vmem, size = 0x20000, scoped, tag = 'input window, operand 0']
    #allocation3 [shape = 's32[2]{0}', space=sflag, size = 0x8, scoped, tag = 'scoped memory for tpu_custom_call.1']
    #allocation4 [shape = 'u8[131072]{0}', space=vmem, size = 0x20000, scoped, tag = 'output window, operand 0']
    %12 = vsyncpa [#allocation3], 0
    %s13 = scalar_lea.sflag [#allocation3], 1
    %14 = vsyncpa %s13, 0
    loop: start=0, step=1, limit=4
    $region2: #{tpu_custom_call.1} parent=1 // loop_pre_header
      _
    $region3: #{tpu_custom_call.1} parent=1 // loop_header
      %s16 = sphi 0, %s20
      %p17 = scmp.ge.s32.totalorder %s16, 4
      %s26 = sphi 0, %s28
      %s29 = sphi 0, %s26
      %s30 = sphi 0, %s29
      %s46 = sphi 0, %s30
      %s50 = sphi 0, %s50
      %s52 = sphi 0, %s50
      %s53 = sphi 0, %s52
      %s67 = sphi 0, %s53
      %s71 = sphi 0, %s71
      %s73 = sphi 0, %s71
      %s74 = sphi 0, %s73
      %s88 = sphi 0, %s74
      %s92 = sphi 0, %s92
      %s94 = sphi 0, %s92
      %s95 = sphi 0, %s94
      %s109 = sphi 0, %s95
      %s113 = sphi 0, %s113
      %s115 = sphi 0, %s113
      %s116 = sphi 0, %s115
      %s130 = sphi 0, %s116
      %s134 = sphi 0, %s134
      %s136 = sphi 0, %s134
      %s137 = sphi 0, %s136
      %s151 = sphi 0, %s137
      %s155 = sphi 0, %s155
      %s157 = sphi 0, %s155
      %s158 = sphi 0, %s157
      %s172 = sphi 0, %s158
      %s178 = sphi 0, %s180
      %s181 = sphi 0, %s178
      %s182 = sphi 0, %s181
      %s198 = sphi 0, %s182
    $region4: #{tpu_custom_call.1} parent=1 // loop_header_branch
      %19 = sbr.rel (%p17) target = $region8
    $region5: #{tpu_custom_call.1} parent=1 // loop_body
      %s21 = ssub.s32 %s16, 1
      %s22 = ssub.s32 %s16, 2
      %s23 = sadd.s32 %s16, 1
      %s24 = ssub.s32 %s16, %s23
      %p25 = scmp.eq.s32.totalorder %s24, 0
      %s27 = sadd.s32 %s26, 1
      %s28 = scalar_select %p25, %s26, %s27
      %p31 = pneg %p25
      %p32 = scmp.eq.s32.totalorder %s16, 1
      %p33 = por %p31, %p32
      %p34 = scmp.ne.s32.totalorder %s26, %s29
      %p35 = scmp.eq.s32.totalorder %s16, 0
      %p36 = por %p34, %p35
      %p37 = scmp.ne.s32.totalorder %s26, %s29
      %p38 = scmp.eq.s32.totalorder %s21, 1
      %p39 = por %p37, %p38
      %p40 = scmp.ne.s32.totalorder %s29, %s30
      %p41 = scmp.eq.s32.totalorder %s21, 0
      %p42 = por %p40, %p41
      %p43 = scmp.ne.s32.totalorder %s29, %s30
      %p44 = scmp.eq.s32.totalorder %s22, 1
      %p45 = por %p43, %p44
      %p47 = scmp.ne.s32.totalorder %s30, %s46
      %p48 = scmp.eq.s32.totalorder %s22, 0
      %p49 = por %p47, %p48
      %s51 = sadd.s32 %s50, 1
      %p54 = scmp.eq.s32.totalorder %s16, 1
      %p55 = scmp.ne.s32.totalorder %s50, %s52
      %p56 = scmp.eq.s32.totalorder %s16, 0
      %p57 = por %p55, %p56
      %p58 = scmp.ne.s32.totalorder %s50, %s52
      %p59 = scmp.eq.s32.totalorder %s21, 1
      %p60 = por %p58, %p59
      %p61 = scmp.ne.s32.totalorder %s52, %s53
      %p62 = scmp.eq.s32.totalorder %s21, 0
      %p63 = por %p61, %p62
      %p64 = scmp.ne.s32.totalorder %s52, %s53
      %p65 = scmp.eq.s32.totalorder %s22, 1
      %p66 = por %p64, %p65
      %p68 = scmp.ne.s32.totalorder %s53, %s67
      %p69 = scmp.eq.s32.totalorder %s22, 0
      %p70 = por %p68, %p69
      %s72 = sadd.s32 %s71, 1
      %p75 = scmp.eq.s32.totalorder %s16, 1
      %p76 = scmp.ne.s32.totalorder %s71, %s73
      %p77 = scmp.eq.s32.totalorder %s16, 0
      %p78 = por %p76, %p77
      %p79 = scmp.ne.s32.totalorder %s71, %s73
      %p80 = scmp.eq.s32.totalorder %s21, 1
      %p81 = por %p79, %p80
      %p82 = scmp.ne.s32.totalorder %s73, %s74
      %p83 = scmp.eq.s32.totalorder %s21, 0
      %p84 = por %p82, %p83
      %p85 = scmp.ne.s32.totalorder %s73, %s74
      %p86 = scmp.eq.s32.totalorder %s22, 1
      %p87 = por %p85, %p86
      %p89 = scmp.ne.s32.totalorder %s74, %s88
      %p90 = scmp.eq.s32.totalorder %s22, 0
      %p91 = por %p89, %p90
      %s93 = sadd.s32 %s92, 1
      %p96 = scmp.eq.s32.totalorder %s16, 1
      %p97 = scmp.ne.s32.totalorder %s92, %s94
      %p98 = scmp.eq.s32.totalorder %s16, 0
      %p99 = por %p97, %p98
      %p100 = scmp.ne.s32.totalorder %s92, %s94
      %p101 = scmp.eq.s32.totalorder %s21, 1
      %p102 = por %p100, %p101
      %p103 = scmp.ne.s32.totalorder %s94, %s95
      %p104 = scmp.eq.s32.totalorder %s21, 0
      %p105 = por %p103, %p104
      %p106 = scmp.ne.s32.totalorder %s94, %s95
      %p107 = scmp.eq.s32.totalorder %s22, 1
      %p108 = por %p106, %p107
      %p110 = scmp.ne.s32.totalorder %s95, %s109
      %p111 = scmp.eq.s32.totalorder %s22, 0
      %p112 = por %p110, %p111
      %s114 = sadd.s32 %s113, 1
      %p117 = scmp.eq.s32.totalorder %s16, 1
      %p118 = scmp.ne.s32.totalorder %s113, %s115
      %p119 = scmp.eq.s32.totalorder %s16, 0
      %p120 = por %p118, %p119
      %p121 = scmp.ne.s32.totalorder %s113, %s115
      %p122 = scmp.eq.s32.totalorder %s21, 1
      %p123 = por %p121, %p122
      %p124 = scmp.ne.s32.totalorder %s115, %s116
      %p125 = scmp.eq.s32.totalorder %s21, 0
      %p126 = por %p124, %p125
      %p127 = scmp.ne.s32.totalorder %s115, %s116
      %p128 = scmp.eq.s32.totalorder %s22, 1
      %p129 = por %p127, %p128
      %p131 = scmp.ne.s32.totalorder %s116, %s130
      %p132 = scmp.eq.s32.totalorder %s22, 0
      %p133 = por %p131, %p132
      %s135 = sadd.s32 %s134, 1
      %p138 = scmp.eq.s32.totalorder %s16, 1
      %p139 = scmp.ne.s32.totalorder %s134, %s136
      %p140 = scmp.eq.s32.totalorder %s16, 0
      %p141 = por %p139, %p140
      %p142 = scmp.ne.s32.totalorder %s134, %s136
      %p143 = scmp.eq.s32.totalorder %s21, 1
      %p144 = por %p142, %p143
      %p145 = scmp.ne.s32.totalorder %s136, %s137
      %p146 = scmp.eq.s32.totalorder %s21, 0
      %p147 = por %p145, %p146
      %p148 = scmp.ne.s32.totalorder %s136, %s137
      %p149 = scmp.eq.s32.totalorder %s22, 1
      %p150 = por %p148, %p149
      %p152 = scmp.ne.s32.totalorder %s137, %s151
      %p153 = scmp.eq.s32.totalorder %s22, 0
      %p154 = por %p152, %p153
      %s156 = sadd.s32 %s155, 1
      %p159 = scmp.eq.s32.totalorder %s16, 1
      %p160 = scmp.ne.s32.totalorder %s155, %s157
      %p161 = scmp.eq.s32.totalorder %s16, 0
      %p162 = por %p160, %p161
      %p163 = scmp.ne.s32.totalorder %s155, %s157
      %p164 = scmp.eq.s32.totalorder %s21, 1
      %p165 = por %p163, %p164
      %p166 = scmp.ne.s32.totalorder %s157, %s158
      %p167 = scmp.eq.s32.totalorder %s21, 0
      %p168 = por %p166, %p167
      %p169 = scmp.ne.s32.totalorder %s157, %s158
      %p170 = scmp.eq.s32.totalorder %s22, 1
      %p171 = por %p169, %p170
      %p173 = scmp.ne.s32.totalorder %s158, %s172
      %p174 = scmp.eq.s32.totalorder %s22, 0
      %p175 = por %p173, %p174
      %s176 = ssub.s32 %s16, %s23
      %p177 = scmp.eq.s32.totalorder %s176, 0
      %s179 = sadd.s32 %s178, 1
      %s180 = scalar_select %p177, %s178, %s179
      %p183 = pneg %p177
      %p184 = scmp.eq.s32.totalorder %s16, 1
      %p185 = por %p183, %p184
      %p186 = scmp.ne.s32.totalorder %s178, %s181
      %p187 = scmp.eq.s32.totalorder %s16, 0
      %p188 = por %p186, %p187
      %p189 = scmp.ne.s32.totalorder %s178, %s181
      %p190 = scmp.eq.s32.totalorder %s21, 1
      %p191 = por %p189, %p190
      %p192 = scmp.ne.s32.totalorder %s181, %s182
      %p193 = scmp.eq.s32.totalorder %s21, 0
      %p194 = por %p192, %p193
      %p195 = scmp.ne.s32.totalorder %s181, %s182
      %p196 = scmp.eq.s32.totalorder %s22, 1
      %p197 = por %p195, %p196
      %p199 = scmp.ne.s32.totalorder %s182, %s198
      %p200 = scmp.eq.s32.totalorder %s22, 0
      %p201 = por %p199, %p200
      %p202 = scmp.le.s32.totalorder 1, %s16
      %p203 = scmp.lt.s32.totalorder %s16, 3
      %p204 = pnand %p202, %p203
      %p205 = pneg %p204
      // Predicated region
      $region9: #{tpu_custom_call.1} parent=5 // pred_check
        _
      $region10: #{tpu_custom_call.1} parent=5 // pred_check_branch
        %207 = sbr.rel (%p204) target = $region12
      $region11: #{tpu_custom_call.1} parent=5 // pred_region
        %s208 = ssub.s32 %s16, 1
        // Predicated region
        $region13: #{tpu_custom_call.1} parent=11 // pred_check
          %p209 = pneg %p63
        $region14: #{tpu_custom_call.1} parent=11 // pred_check_branch
          %211 = sbr.rel (%p209) target = $region16
        $region15: #{tpu_custom_call.1} parent=11 // pred_region
          _
        $region16: #{tpu_custom_call.1} parent=11 // pred_fallthru
          _
        // Predicated region
        $region17: #{tpu_custom_call.1} parent=11 // pred_check
          %p212 = pneg %p84
        $region18: #{tpu_custom_call.1} parent=11 // pred_check_branch
          %214 = sbr.rel (%p212) target = $region20
        $region19: #{tpu_custom_call.1} parent=11 // pred_region
          _
        $region20: #{tpu_custom_call.1} parent=11 // pred_fallthru
          _
        // Predicated region
        $region21: #{tpu_custom_call.1} parent=11 // pred_check
          %p215 = pneg %p105
        $region22: #{tpu_custom_call.1} parent=11 // pred_check_branch
          %217 = sbr.rel (%p215) target = $region24
        $region23: #{tpu_custom_call.1} parent=11 // pred_region
          _
        $region24: #{tpu_custom_call.1} parent=11 // pred_fallthru
          _
        // Predicated region
        $region25: #{tpu_custom_call.1} parent=11 // pred_check
          %p218 = pneg %p126
        $region26: #{tpu_custom_call.1} parent=11 // pred_check_branch
          %220 = sbr.rel (%p218) target = $region28
        $region27: #{tpu_custom_call.1} parent=11 // pred_region
          _
        $region28: #{tpu_custom_call.1} parent=11 // pred_fallthru
          _
        // Predicated region
        $region29: #{tpu_custom_call.1} parent=11 // pred_check
          %p221 = pneg %p147
        $region30: #{tpu_custom_call.1} parent=11 // pred_check_branch
          %223 = sbr.rel (%p221) target = $region32
        $region31: #{tpu_custom_call.1} parent=11 // pred_region
          _
        $region32: #{tpu_custom_call.1} parent=11 // pred_fallthru
          _
        // Predicated region
        $region33: #{tpu_custom_call.1} parent=11 // pred_check
          %p224 = pneg %p168
        $region34: #{tpu_custom_call.1} parent=11 // pred_check_branch
          %226 = sbr.rel (%p224) target = $region36
        $region35: #{tpu_custom_call.1} parent=11 // pred_region
          _
        $region36: #{tpu_custom_call.1} parent=11 // pred_fallthru
          _
      $region12: #{tpu_custom_call.1} parent=5 // pred_fallthru
        _
      %p227 = scmp.lt.s32.totalorder %s16, 2
      // Predicated region
      $region37: #{tpu_custom_call.1} parent=5 // pred_check
        %p228 = pneg %p227
      $region38: #{tpu_custom_call.1} parent=5 // pred_check_branch
        %230 = sbr.rel (%p228) target = $region40
      $region39: #{tpu_custom_call.1} parent=5 // pred_region
        // Predicated region
        $region41: #{tpu_custom_call.1} parent=39 // pred_check
          %p231 = pneg %p36
        $region42: #{tpu_custom_call.1} parent=39 // pred_check_branch
          %233 = sbr.rel (%p231) target = $region44
        $region43: #{tpu_custom_call.1} parent=39 // pred_region
          %s234 = sand.u32 %s26, 1
          %s235 = scalar_lea.sflag [#allocation3], %s234
          %s236 = sand.u32 %s26, 1
          %s237 = smul.addr %s236, 128
          %s238 = scalar_lea.vmem [#allocation2], %s237
          %s239 = smul.u32 16, %s16
          %s240 = ssub.s32 25, %s239
          %p241 = scmp.lt.s32.totalorder %s240, 16
          %s242 = scalar_select %p241, %s240, 16
          %s243 = smul.u32 128, %s242
          %s245 = ssub.s32 2048, %s243
          %246 = vsyncadd %s235, %s245
          %p247 = scmp.ne.s32.totalorder 0, %s243
          %s248 = smul.addr %s239, 128
          %s249 = scalar_lea.hbm %s0, %s248
          %s250 = smul.u32 8, %s242
          %s251 = sshll.u32 %s238, 4
          %s252 = int_to_ptr.vmem [resolvable:$true] %s251
          %s253 = sshll.u32 %s250, 4
          %257 = dma.hbm_to_vmem [thread:$0]  (%p247), %s249, %s253, %s252, %s235, 128, 128, 8
        $region44: #{tpu_custom_call.1} parent=39 // pred_fallthru
          _
      $region40: #{tpu_custom_call.1} parent=5 // pred_fallthru
        _
      %p258 = scmp.le.s32.totalorder 1, %s16
      %p259 = scmp.lt.s32.totalorder %s16, 3
      %p260 = pnand %p258, %p259
      %p261 = pneg %p260
      // Predicated region
      $region45: #{tpu_custom_call.1} parent=5 // pred_check
        _
      $region46: #{tpu_custom_call.1} parent=5 // pred_check_branch
        %263 = sbr.rel (%p260) target = $region48
      $region47: #{tpu_custom_call.1} parent=5 // pred_region
        %s264 = ssub.s32 %s16, 1
        %s265 = sand.u32 %s29, 1
        %s266 = scalar_lea.sflag [#allocation3], %s265
        %s267 = sand.u32 %s29, 1
        %s268 = smul.addr %s267, 128
        %s269 = scalar_lea.vmem [#allocation2], %s268
        // Predicated region
        $region49: #{tpu_custom_call.1} parent=47 // pred_check
          %p270 = pneg %p42
        $region50: #{tpu_custom_call.1} parent=47 // pred_check_branch
          %272 = sbr.rel (%p270) target = $region52
        $region51: #{tpu_custom_call.1} parent=47 // pred_region
          %273 = dma.done %s266, 2048
        $region52: #{tpu_custom_call.1} parent=47 // pred_fallthru
          _
        %s274 = sand.u32 %s29, 1
        %s275 = scalar_lea.sflag [#allocation3], %s274
        %s276 = sand.u32 %s29, 1
        %s277 = smul.addr %s276, 128
        %s278 = scalar_lea.vmem [#allocation2], %s277
        %p279 = pneg %p42
        %p280 = pneg %p39
        %p281 = pneg %p63
        %p282 = pneg %p60
        %p283 = pneg %p84
        %p284 = pneg %p81
        %p285 = pneg %p105
        %p286 = pneg %p102
        %p287 = pneg %p126
        %p288 = pneg %p123
        %p289 = pneg %p147
        %p290 = pneg %p144
        %p291 = pneg %p168
        %p292 = pneg %p165
        %p293 = pneg %p194
        %p294 = pneg %p191
        %s295 = sand.u32 %s181, 1
        %s296 = sand.u32 %s181, 1
        %s297 = smul.addr %s296, 128
        %s298 = scalar_lea.vmem [#allocation4], %s297
        %s299 = smul.u32 16, %s21
        %s300 = ssub.s32 25, %s299
        %p301 = scmp.lt.s32.totalorder %s300, 16
        %s302 = scalar_select %p301, %s300, 16
        %s303 = smul.u32 128, %s302
        %s304 = smul.u32 16, %s21
        %s305 = ssub.s32 25, %s304
        %p306 = scmp.lt.s32.totalorder %s305, 16
        %s307 = scalar_select %p306, %s305, 16
        %s308 = smul.u32 128, %s307
        %v310 = vld [vmem:[%s269] sm:$0xff]
        %v311 = vld [vmem:[%s269 + $0x8] sm:$0xff]
        %v312 = vld [vmem:[%s269 + $0x10] sm:$0xff]
        %v313 = vld [vmem:[%s269 + $0x18] sm:$0xff]
        %v314 = vld [vmem:[%s269 + $0x20] sm:$0xff]
        %v315 = vld [vmem:[%s269 + $0x28] sm:$0xff]
        %v316 = vld [vmem:[%s269 + $0x30] sm:$0xff]
        %v317 = vld [vmem:[%s269 + $0x38] sm:$0xff]
        %v318 = vld [vmem:[%s269 + $0x40] sm:$0xff]
        %v319 = vld [vmem:[%s269 + $0x48] sm:$0xff]
        %v320 = vld [vmem:[%s269 + $0x50] sm:$0xff]
        %v321 = vld [vmem:[%s269 + $0x58] sm:$0xff]
        %v322 = vld [vmem:[%s269 + $0x60] sm:$0xff]
        %v323 = vld [vmem:[%s269 + $0x68] sm:$0xff]
        %v324 = vld [vmem:[%s269 + $0x70] sm:$0xff]
        %v325 = vld [vmem:[%s269 + $0x78] sm:$0xff]
        %v326 = vpack.c.bf16 %v311, %v310
        %v327 = vpack.c.bf16 %v313, %v312
        %v328 = vpack.c.bf16 %v315, %v314
        %v329 = vpack.c.bf16 %v317, %v316
        %v330 = vpack.c.bf16 %v319, %v318
        %v331 = vpack.c.bf16 %v321, %v320
        %v332 = vpack.c.bf16 %v323, %v322
        %v333 = vpack.c.bf16 %v325, %v324
        %v334 = vld [vmem:[%s1] sm:$0xff]
        %v335 = vld [vmem:[%s1 + $0x8] sm:$0xff]
        %v336 = vld [vmem:[%s1 + $0x10] sm:$0xff]
        %v337 = vld [vmem:[%s1 + $0x18] sm:$0xff]
        %v338 = vld [vmem:[%s1 + $0x20] sm:$0xff]
        %v339 = vld [vmem:[%s1 + $0x28] sm:$0xff]
        %v340 = vld [vmem:[%s1 + $0x30] sm:$0xff]
        %v341 = vld [vmem:[%s1 + $0x38] sm:$0xff]
        %v342 = vld [vmem:[%s1 + $0x40] sm:$0xff]
        %v343 = vld [vmem:[%s1 + $0x48] sm:$0xff]
        %v344 = vld [vmem:[%s1 + $0x50] sm:$0xff]
        %v345 = vld [vmem:[%s1 + $0x58] sm:$0xff]
        %v346 = vld [vmem:[%s1 + $0x60] sm:$0xff]
        %v347 = vld [vmem:[%s1 + $0x68] sm:$0xff]
        %v348 = vld [vmem:[%s1 + $0x70] sm:$0xff]
        %v349 = vld [vmem:[%s1 + $0x78] sm:$0xff]
        %v350 = vld [vmem:[%s2] sm:$0x3]
        %v352 = vlaneseq
        %v353 = vshrl.u32 %v352, 7
        %v354 = vsub.s32 0, %v353
        %v355 = vrot.slane %v350, %v354
        %v356 = vlaneseq
        %v357 = vshrl.u32 %v356, 7
        %v358 = vsub.s32 1, %v357
        %v359 = vrot.slane %v350, %v358
        %v378 = vunpack.c.l.b16 %v334
        %v379 = vunpack.c.h.b16 %v334
        %v380 = vunpack.c.l.b16 %v335
        %v381 = vunpack.c.h.b16 %v335
        %v382 = vunpack.c.l.b16 %v336
        %v383 = vunpack.c.h.b16 %v336
        %v384 = vunpack.c.l.b16 %v337
        %v385 = vunpack.c.h.b16 %v337
        %v386 = vunpack.c.l.b16 %v338
        %v387 = vunpack.c.h.b16 %v338
        %v388 = vunpack.c.l.b16 %v339
        %v389 = vunpack.c.h.b16 %v339
        %v390 = vunpack.c.l.b16 %v340
        %v391 = vunpack.c.h.b16 %v340
        %v392 = vunpack.c.l.b16 %v341
        %v393 = vunpack.c.h.b16 %v341
        %v394 = vunpack.c.l.b16 %v342
        %v395 = vunpack.c.h.b16 %v342
        %v396 = vunpack.c.l.b16 %v343
        %v397 = vunpack.c.h.b16 %v343
        %v398 = vunpack.c.l.b16 %v344
        %v399 = vunpack.c.h.b16 %v344
        %v400 = vunpack.c.l.b16 %v345
        %v401 = vunpack.c.h.b16 %v345
        %v402 = vunpack.c.l.b16 %v346
        %v403 = vunpack.c.h.b16 %v346
        %v404 = vunpack.c.l.b16 %v347
        %v405 = vunpack.c.h.b16 %v347
        %v406 = vunpack.c.l.b16 %v348
        %v407 = vunpack.c.h.b16 %v348
        %v408 = vunpack.c.l.b16 %v349
        %v409 = vunpack.c.h.b16 %v349
        %v410 = vpack.c.b16 %v380, %v378
        %v411 = vpack.c.b16 %v381, %v379
        %v412 = vpack.c.b16 %v384, %v382
        %v413 = vpack.c.b16 %v385, %v383
        %v414 = vpack.c.b16 %v388, %v386
        %v415 = vpack.c.b16 %v389, %v387
        %v416 = vpack.c.b16 %v392, %v390
        %v417 = vpack.c.b16 %v393, %v391
        %v418 = vpack.c.b16 %v396, %v394
        %v419 = vpack.c.b16 %v397, %v395
        %v420 = vpack.c.b16 %v400, %v398
        %v421 = vpack.c.b16 %v401, %v399
        %v422 = vpack.c.b16 %v404, %v402
        %v423 = vpack.c.b16 %v405, %v403
        %v424 = vpack.c.b16 %v408, %v406
        %v425 = vpack.c.b16 %v409, %v407
        %442 = vmatprep.subr.bf16.mxu0 %v425
        %443 = vmatpush1.bf16.msra.mxu0 %v424
        %444 = vmatprep.subr.bf16.mxu0 %v423
        %445 = vmatpush1.bf16.msra.mxu0 %v422
        %446 = vmatprep.subr.bf16.mxu0 %v421
        %447 = vmatpush1.bf16.msra.mxu0 %v420
        %448 = vmatprep.subr.bf16.mxu0 %v419
        %449 = vmatpush1.bf16.msra.mxu0 %v418
        %450 = vmatprep.subr.bf16.mxu0 %v417
        %451 = vmatpush1.bf16.msra.mxu0 %v416
        %452 = vmatprep.subr.bf16.mxu0 %v415
        %453 = vmatpush1.bf16.msra.mxu0 %v414
        %454 = vmatprep.subr.bf16.mxu0 %v413
        %455 = vmatpush1.bf16.msra.mxu0 %v412
        %456 = vmatprep.subr.bf16.mxu0 %v411
        %457 = vmatpush1.bf16.msra.mxu0 %v410
        %458 = vmatprep.subr.bf16.mxu0 0
        %459 = vmatpush2.bf16.msra.mxu0 0
        %460 = vmatprep.subr.bf16.mxu0 0
        %461 = vmatpush2.bf16.msra.mxu0 0
        %462 = vmatprep.subr.bf16.mxu0 0
        %463 = vmatpush2.bf16.msra.mxu0 0
        %464 = vmatprep.subr.bf16.mxu0 0
        %465 = vmatpush2.bf16.msra.mxu0 0
        %466 = vmatprep.subr.bf16.mxu0 0
        %467 = vmatpush2.bf16.msra.mxu0 0
        %468 = vmatprep.subr.bf16.mxu0 0
        %469 = vmatpush2.bf16.msra.mxu0 0
        %470 = vmatprep.subr.bf16.mxu0 0
        %471 = vmatpush2.bf16.msra.mxu0 0
        %472 = vmatprep.subr.bf16.mxu0 0
        %473 = vmatpush2.bf16.msra.mxu0 0
        %474 = vmatprep.mubr.bf16.mxu0 0
        %475 = vmatmul.mubr.bf16.gmra.mxu0 %v326
        %v476 = vpop.f32.mrf.mxu0
        %v477 = vadd.f32 %v355, %v476
        %v478 = vpop.f32.mrf.mxu0
        %v479 = vadd.f32 %v359, %v478
        %v480 = vpop.f32.mrf.mxu0
        %v481 = vadd.f32 %v355, %v480
        %v482 = vpop.f32.mrf.mxu0
        %v483 = vadd.f32 %v359, %v482
        %484 = vmatprep.mubr.bf16.mxu0 0
        %485 = vmatmul.mubr.bf16.gmra.mxu0 %v327
        %v486 = vpop.f32.mrf.mxu0
        %v487 = vadd.f32 %v355, %v486
        %v488 = vpop.f32.mrf.mxu0
        %v489 = vadd.f32 %v359, %v488
        %v490 = vpop.f32.mrf.mxu0
        %v491 = vadd.f32 %v355, %v490
        %v492 = vpop.f32.mrf.mxu0
        %v493 = vadd.f32 %v359, %v492
        %494 = vmatprep.mubr.bf16.mxu0 0
        %495 = vmatmul.mubr.bf16.gmra.mxu0 %v328
        %v496 = vpop.f32.mrf.mxu0
        %v497 = vadd.f32 %v355, %v496
        %v498 = vpop.f32.mrf.mxu0
        %v499 = vadd.f32 %v359, %v498
        %v500 = vpop.f32.mrf.mxu0
        %v501 = vadd.f32 %v355, %v500
        %v502 = vpop.f32.mrf.mxu0
        %v503 = vadd.f32 %v359, %v502
        %504 = vmatprep.mubr.bf16.mxu0 0
        %505 = vmatmul.mubr.bf16.gmra.mxu0 %v329
        %v506 = vpop.f32.mrf.mxu0
        %v507 = vadd.f32 %v355, %v506
        %v508 = vpop.f32.mrf.mxu0
        %v509 = vadd.f32 %v359, %v508
        %v510 = vpop.f32.mrf.mxu0
        %v511 = vadd.f32 %v355, %v510
        %v512 = vpop.f32.mrf.mxu0
        %v513 = vadd.f32 %v359, %v512
        %514 = vmatprep.mubr.bf16.mxu0 0
        %515 = vmatmul.mubr.bf16.gmra.mxu0 %v330
        %v516 = vpop.f32.mrf.mxu0
        %v517 = vadd.f32 %v355, %v516
        %v518 = vpop.f32.mrf.mxu0
        %v519 = vadd.f32 %v359, %v518
        %v520 = vpop.f32.mrf.mxu0
        %v521 = vadd.f32 %v355, %v520
        %v522 = vpop.f32.mrf.mxu0
        %v523 = vadd.f32 %v359, %v522
        %524 = vmatprep.mubr.bf16.mxu0 0
        %525 = vmatmul.mubr.bf16.gmra.mxu0 %v331
        %v526 = vpop.f32.mrf.mxu0
        %v527 = vadd.f32 %v355, %v526
        %v528 = vpop.f32.mrf.mxu0
        %v529 = vadd.f32 %v359, %v528
        %v530 = vpop.f32.mrf.mxu0
        %v531 = vadd.f32 %v355, %v530
        %v532 = vpop.f32.mrf.mxu0
        %v533 = vadd.f32 %v359, %v532
        %534 = vmatprep.mubr.bf16.mxu0 0
        %535 = vmatmul.mubr.bf16.gmra.mxu0 %v332
        %v536 = vpop.f32.mrf.mxu0
        %v537 = vadd.f32 %v355, %v536
        %v538 = vpop.f32.mrf.mxu0
        %v539 = vadd.f32 %v359, %v538
        %v540 = vpop.f32.mrf.mxu0
        %v541 = vadd.f32 %v355, %v540
        %v542 = vpop.f32.mrf.mxu0
        %v543 = vadd.f32 %v359, %v542
        %544 = vmatprep.mubr.bf16.mxu0 0
        %545 = vmatmul.mubr.bf16.gmra.mxu0 %v333
        %v546 = vpop.f32.mrf.mxu0
        %v547 = vadd.f32 %v355, %v546
        %v548 = vpop.f32.mrf.mxu0
        %v549 = vadd.f32 %v359, %v548
        %v550 = vpop.f32.mrf.mxu0
        %v551 = vadd.f32 %v355, %v550
        %v552 = vpop.f32.mrf.mxu0
        %v553 = vadd.f32 %v359, %v552
        %554 = vdwg.mxu0
        %v555 = vadd.f32 %v477, %v479
        %556 = vadd.xlane.f32.xlu0 %v555
        %v557 = vpop.xlane.xlu0 %556
        %v558 = vadd.f32 %v481, %v483
        %559 = vadd.xlane.f32.xlu0 %v558
        %v560 = vpop.xlane.xlu0 %559
        %v561 = vadd.f32 %v487, %v489
        %562 = vadd.xlane.f32.xlu0 %v561
        %v563 = vpop.xlane.xlu0 %562
        %v564 = vadd.f32 %v491, %v493
        %565 = vadd.xlane.f32.xlu0 %v564
        %v566 = vpop.xlane.xlu0 %565
        %v567 = vadd.f32 %v497, %v499
        %568 = vadd.xlane.f32.xlu0 %v567
        %v569 = vpop.xlane.xlu0 %568
        %v570 = vadd.f32 %v501, %v503
        %571 = vadd.xlane.f32.xlu0 %v570
        %v572 = vpop.xlane.xlu0 %571
        %v573 = vadd.f32 %v507, %v509
        %574 = vadd.xlane.f32.xlu0 %v573
        %v575 = vpop.xlane.xlu0 %574
        %v576 = vadd.f32 %v511, %v513
        %577 = vadd.xlane.f32.xlu0 %v576
        %v578 = vpop.xlane.xlu0 %577
        %v579 = vadd.f32 %v517, %v519
        %580 = vadd.xlane.f32.xlu0 %v579
        %v581 = vpop.xlane.xlu0 %580
        %v582 = vadd.f32 %v521, %v523
        %583 = vadd.xlane.f32.xlu0 %v582
        %v584 = vpop.xlane.xlu0 %583
        %v585 = vadd.f32 %v527, %v529
        %586 = vadd.xlane.f32.xlu0 %v585
        %v587 = vpop.xlane.xlu0 %586
        %v588 = vadd.f32 %v531, %v533
        %589 = vadd.xlane.f32.xlu0 %v588
        %v590 = vpop.xlane.xlu0 %589
        %v591 = vadd.f32 %v537, %v539
        %592 = vadd.xlane.f32.xlu0 %v591
        %v593 = vpop.xlane.xlu0 %592
        %v594 = vadd.f32 %v541, %v543
        %595 = vadd.xlane.f32.xlu0 %v594
        %v596 = vpop.xlane.xlu0 %595
        %v597 = vadd.f32 %v547, %v549
        %598 = vadd.xlane.f32.xlu0 %v597
        %v599 = vpop.xlane.xlu0 %598
        %v600 = vadd.f32 %v551, %v553
        %601 = vadd.xlane.f32.xlu0 %v600
        %v602 = vpop.xlane.xlu0 %601
        %v603 = vrcp.pop 256.0
        %v604 = vmul.f32 %v557, %v603
        %v605 = vmul.f32 %v560, %v603
        %v606 = vmul.f32 %v563, %v603
        %v607 = vmul.f32 %v566, %v603
        %v608 = vmul.f32 %v569, %v603
        %v609 = vmul.f32 %v572, %v603
        %v610 = vmul.f32 %v575, %v603
        %v611 = vmul.f32 %v578, %v603
        %v612 = vmul.f32 %v581, %v603
        %v613 = vmul.f32 %v584, %v603
        %v614 = vmul.f32 %v587, %v603
        %v615 = vmul.f32 %v590, %v603
        %v616 = vmul.f32 %v593, %v603
        %v617 = vmul.f32 %v596, %v603
        %v618 = vmul.f32 %v599, %v603
        %v619 = vmul.f32 %v602, %v603
        %v620 = vmul.f32 %v477, %v477
        %v621 = vmul.f32 %v479, %v479
        %v622 = vmul.f32 %v481, %v481
        %v623 = vmul.f32 %v483, %v483
        %v624 = vmul.f32 %v487, %v487
        %v625 = vmul.f32 %v489, %v489
        %v626 = vmul.f32 %v491, %v491
        %v627 = vmul.f32 %v493, %v493
        %v628 = vmul.f32 %v497, %v497
        %v629 = vmul.f32 %v499, %v499
        %v630 = vmul.f32 %v501, %v501
        %v631 = vmul.f32 %v503, %v503
        %v632 = vmul.f32 %v507, %v507
        %v633 = vmul.f32 %v509, %v509
        %v634 = vmul.f32 %v511, %v511
        %v635 = vmul.f32 %v513, %v513
        %v636 = vmul.f32 %v517, %v517
        %v637 = vmul.f32 %v519, %v519
        %v638 = vmul.f32 %v521, %v521
        %v639 = vmul.f32 %v523, %v523
        %v640 = vmul.f32 %v527, %v527
        %v641 = vmul.f32 %v529, %v529
        %v642 = vmul.f32 %v531, %v531
        %v643 = vmul.f32 %v533, %v533
        %v644 = vmul.f32 %v537, %v537
        %v645 = vmul.f32 %v539, %v539
        %v646 = vmul.f32 %v541, %v541
        %v647 = vmul.f32 %v543, %v543
        %v648 = vmul.f32 %v547, %v547
        %v649 = vmul.f32 %v549, %v549
        %v650 = vmul.f32 %v551, %v551
        %v651 = vmul.f32 %v553, %v553
        %v652 = vadd.f32 %v620, %v621
        %653 = vadd.xlane.f32.xlu0 %v652
        %v654 = vpop.xlane.xlu0 %653
        %v655 = vadd.f32 %v622, %v623
        %656 = vadd.xlane.f32.xlu0 %v655
        %v657 = vpop.xlane.xlu0 %656
        %v658 = vadd.f32 %v624, %v625
        %659 = vadd.xlane.f32.xlu0 %v658
        %v660 = vpop.xlane.xlu0 %659
        %v661 = vadd.f32 %v626, %v627
        %662 = vadd.xlane.f32.xlu0 %v661
        %v663 = vpop.xlane.xlu0 %662
        %v664 = vadd.f32 %v628, %v629
        %665 = vadd.xlane.f32.xlu0 %v664
        %v666 = vpop.xlane.xlu0 %665
        %v667 = vadd.f32 %v630, %v631
        %668 = vadd.xlane.f32.xlu0 %v667
        %v669 = vpop.xlane.xlu0 %668
        %v670 = vadd.f32 %v632, %v633
        %671 = vadd.xlane.f32.xlu0 %v670
        %v672 = vpop.xlane.xlu0 %671
        %v673 = vadd.f32 %v634, %v635
        %674 = vadd.xlane.f32.xlu0 %v673
        %v675 = vpop.xlane.xlu0 %674
        %v676 = vadd.f32 %v636, %v637
        %677 = vadd.xlane.f32.xlu0 %v676
        %v678 = vpop.xlane.xlu0 %677
        %v679 = vadd.f32 %v638, %v639
        %680 = vadd.xlane.f32.xlu0 %v679
        %v681 = vpop.xlane.xlu0 %680
        %v682 = vadd.f32 %v640, %v641
        %683 = vadd.xlane.f32.xlu0 %v682
        %v684 = vpop.xlane.xlu0 %683
        %v685 = vadd.f32 %v642, %v643
        %686 = vadd.xlane.f32.xlu0 %v685
        %v687 = vpop.xlane.xlu0 %686
        %v688 = vadd.f32 %v644, %v645
        %689 = vadd.xlane.f32.xlu0 %v688
        %v690 = vpop.xlane.xlu0 %689
        %v691 = vadd.f32 %v646, %v647
        %692 = vadd.xlane.f32.xlu0 %v691
        %v693 = vpop.xlane.xlu0 %692
        %v694 = vadd.f32 %v648, %v649
        %695 = vadd.xlane.f32.xlu0 %v694
        %v696 = vpop.xlane.xlu0 %695
        %v697 = vadd.f32 %v650, %v651
        %698 = vadd.xlane.f32.xlu0 %v697
        %v699 = vpop.xlane.xlu0 %698
        %v700 = vmul.f32 %v654, %v603
        %v701 = vmul.f32 %v657, %v603
        %v702 = vmul.f32 %v660, %v603
        %v703 = vmul.f32 %v663, %v603
        %v704 = vmul.f32 %v666, %v603
        %v705 = vmul.f32 %v669, %v603
        %v706 = vmul.f32 %v672, %v603
        %v707 = vmul.f32 %v675, %v603
        %v708 = vmul.f32 %v678, %v603
        %v709 = vmul.f32 %v681, %v603
        %v710 = vmul.f32 %v684, %v603
        %v711 = vmul.f32 %v687, %v603
        %v712 = vmul.f32 %v690, %v603
        %v713 = vmul.f32 %v693, %v603
        %v714 = vmul.f32 %v696, %v603
        %v715 = vmul.f32 %v699, %v603
        %v716 = vmul.f32 %v604, %v604
        %v717 = vmul.f32 %v605, %v605
        %v718 = vmul.f32 %v606, %v606
        %v719 = vmul.f32 %v607, %v607
        %v720 = vmul.f32 %v608, %v608
        %v721 = vmul.f32 %v609, %v609
        %v722 = vmul.f32 %v610, %v610
        %v723 = vmul.f32 %v611, %v611
        %v724 = vmul.f32 %v612, %v612
        %v725 = vmul.f32 %v613, %v613
        %v726 = vmul.f32 %v614, %v614
        %v727 = vmul.f32 %v615, %v615
        %v728 = vmul.f32 %v616, %v616
        %v729 = vmul.f32 %v617, %v617
        %v730 = vmul.f32 %v618, %v618
        %v731 = vmul.f32 %v619, %v619
        %v732 = vsub.f32 %v700, %v716
        %v733 = vsub.f32 %v701, %v717
        %v734 = vsub.f32 %v702, %v718
        %v735 = vsub.f32 %v703, %v719
        %v736 = vsub.f32 %v704, %v720
        %v737 = vsub.f32 %v705, %v721
        %v738 = vsub.f32 %v706, %v722
        %v739 = vsub.f32 %v707, %v723
        %v740 = vsub.f32 %v708, %v724
        %v741 = vsub.f32 %v709, %v725
        %v742 = vsub.f32 %v710, %v726
        %v743 = vsub.f32 %v711, %v727
        %v744 = vsub.f32 %v712, %v728
        %v745 = vsub.f32 %v713, %v729
        %v746 = vsub.f32 %v714, %v730
        %v747 = vsub.f32 %v715, %v731
        %v748 = vmax.f32 %v732, 0.0
        %v749 = vmax.f32 %v733, 0.0
        %v750 = vmax.f32 %v734, 0.0
        %v751 = vmax.f32 %v735, 0.0
        %v752 = vmax.f32 %v736, 0.0
        %v753 = vmax.f32 %v737, 0.0
        %v754 = vmax.f32 %v738, 0.0
        %v755 = vmax.f32 %v739, 0.0
        %v756 = vmax.f32 %v740, 0.0
        %v757 = vmax.f32 %v741, 0.0
        %v758 = vmax.f32 %v742, 0.0
        %v759 = vmax.f32 %v743, 0.0
        %v760 = vmax.f32 %v744, 0.0
        %v761 = vmax.f32 %v745, 0.0
        %v762 = vmax.f32 %v746, 0.0
        %v763 = vmax.f32 %v747, 0.0
        %v764 = vsub.f32 %v477, %v604
        %v765 = vsub.f32 %v479, %v604
        %v766 = vsub.f32 %v481, %v605
        %v767 = vsub.f32 %v483, %v605
        %v768 = vsub.f32 %v487, %v606
        %v769 = vsub.f32 %v489, %v606
        %v770 = vsub.f32 %v491, %v607
        %v771 = vsub.f32 %v493, %v607
        %v772 = vsub.f32 %v497, %v608
        %v773 = vsub.f32 %v499, %v608
        %v774 = vsub.f32 %v501, %v609
        %v775 = vsub.f32 %v503, %v609
        %v776 = vsub.f32 %v507, %v610
        %v777 = vsub.f32 %v509, %v610
        %v778 = vsub.f32 %v511, %v611
        %v779 = vsub.f32 %v513, %v611
        %v780 = vsub.f32 %v517, %v612
        %v781 = vsub.f32 %v519, %v612
        %v782 = vsub.f32 %v521, %v613
        %v783 = vsub.f32 %v523, %v613
        %v784 = vsub.f32 %v527, %v614
        %v785 = vsub.f32 %v529, %v614
        %v786 = vsub.f32 %v531, %v615
        %v787 = vsub.f32 %v533, %v615
        %v788 = vsub.f32 %v537, %v616
        %v789 = vsub.f32 %v539, %v616
        %v790 = vsub.f32 %v541, %v617
        %v791 = vsub.f32 %v543, %v617
        %v792 = vsub.f32 %v547, %v618
        %v793 = vsub.f32 %v549, %v618
        %v794 = vsub.f32 %v551, %v619
        %v795 = vsub.f32 %v553, %v619
        %v796 = vadd.f32 %v748, 1e-05
        %v797 = vadd.f32 %v749, 1e-05
        %v798 = vadd.f32 %v750, 1e-05
        %v799 = vadd.f32 %v751, 1e-05
        %v800 = vadd.f32 %v752, 1e-05
        %v801 = vadd.f32 %v753, 1e-05
        %v802 = vadd.f32 %v754, 1e-05
        %v803 = vadd.f32 %v755, 1e-05
        %v804 = vadd.f32 %v756, 1e-05
        %v805 = vadd.f32 %v757, 1e-05
        %v806 = vadd.f32 %v758, 1e-05
        %v807 = vadd.f32 %v759, 1e-05
        %v808 = vadd.f32 %v760, 1e-05
        %v809 = vadd.f32 %v761, 1e-05
        %v810 = vadd.f32 %v762, 1e-05
        %v811 = vadd.f32 %v763, 1e-05
        %v812 = vrsqrt.pop %v796
        %v813 = vrsqrt.pop %v797
        %v814 = vrsqrt.pop %v798
        %v815 = vrsqrt.pop %v799
        %v816 = vrsqrt.pop %v800
        %v817 = vrsqrt.pop %v801
        %v818 = vrsqrt.pop %v802
        %v819 = vrsqrt.pop %v803
        %v820 = vrsqrt.pop %v804
        %v821 = vrsqrt.pop %v805
        %v822 = vrsqrt.pop %v806
        %v823 = vrsqrt.pop %v807
        %v824 = vrsqrt.pop %v808
        %v825 = vrsqrt.pop %v809
        %v826 = vrsqrt.pop %v810
        %v827 = vrsqrt.pop %v811
        %v828 = vmul.f32 %v764, %v812
        %v829 = vmul.f32 %v765, %v812
        %v830 = vmul.f32 %v766, %v813
        %v831 = vmul.f32 %v767, %v813
        %v832 = vmul.f32 %v768, %v814
        %v833 = vmul.f32 %v769, %v814
        %v834 = vmul.f32 %v770, %v815
        %v835 = vmul.f32 %v771, %v815
        %v836 = vmul.f32 %v772, %v816
        %v837 = vmul.f32 %v773, %v816
        %v838 = vmul.f32 %v774, %v817
        %v839 = vmul.f32 %v775, %v817
        %v840 = vmul.f32 %v776, %v818
        %v841 = vmul.f32 %v777, %v818
        %v842 = vmul.f32 %v778, %v819
        %v843 = vmul.f32 %v779, %v819
        %v844 = vmul.f32 %v780, %v820
        %v845 = vmul.f32 %v781, %v820
        %v846 = vmul.f32 %v782, %v821
        %v847 = vmul.f32 %v783, %v821
        %v848 = vmul.f32 %v784, %v822
        %v849 = vmul.f32 %v785, %v822
        %v850 = vmul.f32 %v786, %v823
        %v851 = vmul.f32 %v787, %v823
        %v852 = vmul.f32 %v788, %v824
        %v853 = vmul.f32 %v789, %v824
        %v854 = vmul.f32 %v790, %v825
        %v855 = vmul.f32 %v791, %v825
        %v856 = vmul.f32 %v792, %v826
        %v857 = vmul.f32 %v793, %v826
        %v858 = vmul.f32 %v794, %v827
        %v859 = vmul.f32 %v795, %v827
        %v860 = vld [vmem:[%s3] sm:$0x3]
        %v862 = vlaneseq
        %v863 = vshrl.u32 %v862, 7
        %v864 = vsub.s32 0, %v863
        %v865 = vrot.slane %v860, %v864
        %v866 = vlaneseq
        %v867 = vshrl.u32 %v866, 7
        %v868 = vsub.s32 1, %v867
        %v869 = vrot.slane %v860, %v868
        %v872 = vmul.f32 %v828, %v865
        %v873 = vmul.f32 %v829, %v869
        %v874 = vmul.f32 %v830, %v865
        %v875 = vmul.f32 %v831, %v869
        %v876 = vmul.f32 %v832, %v865
        %v877 = vmul.f32 %v833, %v869
        %v878 = vmul.f32 %v834, %v865
        %v879 = vmul.f32 %v835, %v869
        %v880 = vmul.f32 %v836, %v865
        %v881 = vmul.f32 %v837, %v869
        %v882 = vmul.f32 %v838, %v865
        %v883 = vmul.f32 %v839, %v869
        %v884 = vmul.f32 %v840, %v865
        %v885 = vmul.f32 %v841, %v869
        %v886 = vmul.f32 %v842, %v865
        %v887 = vmul.f32 %v843, %v869
        %v888 = vmul.f32 %v844, %v865
        %v889 = vmul.f32 %v845, %v869
        %v890 = vmul.f32 %v846, %v865
        %v891 = vmul.f32 %v847, %v869
        %v892 = vmul.f32 %v848, %v865
        %v893 = vmul.f32 %v849, %v869
        %v894 = vmul.f32 %v850, %v865
        %v895 = vmul.f32 %v851, %v869
        %v896 = vmul.f32 %v852, %v865
        %v897 = vmul.f32 %v853, %v869
        %v898 = vmul.f32 %v854, %v865
        %v899 = vmul.f32 %v855, %v869
        %v900 = vmul.f32 %v856, %v865
        %v901 = vmul.f32 %v857, %v869
        %v902 = vmul.f32 %v858, %v865
        %v903 = vmul.f32 %v859, %v869
        %v904 = vld [vmem:[%s4] sm:$0x3]
        %v906 = vlaneseq
        %v907 = vshrl.u32 %v906, 7
        %v908 = vsub.s32 0, %v907
        %v909 = vrot.slane %v904, %v908
        %v910 = vlaneseq
        %v911 = vshrl.u32 %v910, 7
        %v912 = vsub.s32 1, %v911
        %v913 = vrot.slane %v904, %v912
        %v916 = vadd.f32 %v872, %v909
        %v917 = vadd.f32 %v873, %v913
        %v918 = vadd.f32 %v874, %v909
        %v919 = vadd.f32 %v875, %v913
        %v920 = vadd.f32 %v876, %v909
        %v921 = vadd.f32 %v877, %v913
        %v922 = vadd.f32 %v878, %v909
        %v923 = vadd.f32 %v879, %v913
        %v924 = vadd.f32 %v880, %v909
        %v925 = vadd.f32 %v881, %v913
        %v926 = vadd.f32 %v882, %v909
        %v927 = vadd.f32 %v883, %v913
        %v928 = vadd.f32 %v884, %v909
        %v929 = vadd.f32 %v885, %v913
        %v930 = vadd.f32 %v886, %v909
        %v931 = vadd.f32 %v887, %v913
        %v932 = vadd.f32 %v888, %v909
        %v933 = vadd.f32 %v889, %v913
        %v934 = vadd.f32 %v890, %v909
        %v935 = vadd.f32 %v891, %v913
        %v936 = vadd.f32 %v892, %v909
        %v937 = vadd.f32 %v893, %v913
        %v938 = vadd.f32 %v894, %v909
        %v939 = vadd.f32 %v895, %v913
        %v940 = vadd.f32 %v896, %v909
        %v941 = vadd.f32 %v897, %v913
        %v942 = vadd.f32 %v898, %v909
        %v943 = vadd.f32 %v899, %v913
        %v944 = vadd.f32 %v900, %v909
        %v945 = vadd.f32 %v901, %v913
        %v946 = vadd.f32 %v902, %v909
        %v947 = vadd.f32 %v903, %v913
        %v948 = vmax.f32 %v916, 0.0
        %v949 = vmax.f32 %v917, 0.0
        %v950 = vmax.f32 %v918, 0.0
        %v951 = vmax.f32 %v919, 0.0
        %v952 = vmax.f32 %v920, 0.0
        %v953 = vmax.f32 %v921, 0.0
        %v954 = vmax.f32 %v922, 0.0
        %v955 = vmax.f32 %v923, 0.0
        %v956 = vmax.f32 %v924, 0.0
        %v957 = vmax.f32 %v925, 0.0
        %v958 = vmax.f32 %v926, 0.0
        %v959 = vmax.f32 %v927, 0.0
        %v960 = vmax.f32 %v928, 0.0
        %v961 = vmax.f32 %v929, 0.0
        %v962 = vmax.f32 %v930, 0.0
        %v963 = vmax.f32 %v931, 0.0
        %v964 = vmax.f32 %v932, 0.0
        %v965 = vmax.f32 %v933, 0.0
        %v966 = vmax.f32 %v934, 0.0
        %v967 = vmax.f32 %v935, 0.0
        %v968 = vmax.f32 %v936, 0.0
        %v969 = vmax.f32 %v937, 0.0
        %v970 = vmax.f32 %v938, 0.0
        %v971 = vmax.f32 %v939, 0.0
        %v972 = vmax.f32 %v940, 0.0
        %v973 = vmax.f32 %v941, 0.0
        %v974 = vmax.f32 %v942, 0.0
        %v975 = vmax.f32 %v943, 0.0
        %v976 = vmax.f32 %v944, 0.0
        %v977 = vmax.f32 %v945, 0.0
        %v978 = vmax.f32 %v946, 0.0
        %v979 = vmax.f32 %v947, 0.0
        %v980 = vpack.c.bf16 %v950, %v948
        %v981 = vpack.c.bf16 %v951, %v949
        %v982 = vpack.c.bf16 %v954, %v952
        %v983 = vpack.c.bf16 %v955, %v953
        %v984 = vpack.c.bf16 %v958, %v956
        %v985 = vpack.c.bf16 %v959, %v957
        %v986 = vpack.c.bf16 %v962, %v960
        %v987 = vpack.c.bf16 %v963, %v961
        %v988 = vpack.c.bf16 %v966, %v964
        %v989 = vpack.c.bf16 %v967, %v965
        %v990 = vpack.c.bf16 %v970, %v968
        %v991 = vpack.c.bf16 %v971, %v969
        %v992 = vpack.c.bf16 %v974, %v972
        %v993 = vpack.c.bf16 %v975, %v973
        %v994 = vpack.c.bf16 %v978, %v976
        %v995 = vpack.c.bf16 %v979, %v977
        %v996 = vld [vmem:[%s5] sm:$0xf]
        %v997 = vld [vmem:[%s5 + $0x4] sm:$0xf]
        %v998 = vld [vmem:[%s5 + $0x8] sm:$0xf]
        %v999 = vld [vmem:[%s5 + $0xc] sm:$0xf]
        %v1000 = vld [vmem:[%s5 + $0x10] sm:$0xf]
        %v1001 = vld [vmem:[%s5 + $0x14] sm:$0xf]
        %v1002 = vld [vmem:[%s5 + $0x18] sm:$0xf]
        %v1003 = vld [vmem:[%s5 + $0x1c] sm:$0xf]
        %v1004 = vld [vmem:[%s5 + $0x20] sm:$0xf]
        %v1005 = vld [vmem:[%s5 + $0x24] sm:$0xf]
        %v1006 = vld [vmem:[%s5 + $0x28] sm:$0xf]
        %v1007 = vld [vmem:[%s5 + $0x2c] sm:$0xf]
        %v1008 = vld [vmem:[%s5 + $0x30] sm:$0xf]
        %v1009 = vld [vmem:[%s5 + $0x34] sm:$0xf]
        %v1010 = vld [vmem:[%s5 + $0x38] sm:$0xf]
        %v1011 = vld [vmem:[%s5 + $0x3c] sm:$0xf]
        %v1012 = vld [vmem:[%s5 + $0x40] sm:$0xf]
        %v1013 = vld [vmem:[%s5 + $0x44] sm:$0xf]
        %v1014 = vld [vmem:[%s5 + $0x48] sm:$0xf]
        %v1015 = vld [vmem:[%s5 + $0x4c] sm:$0xf]
        %v1016 = vld [vmem:[%s5 + $0x50] sm:$0xf]
        %v1017 = vld [vmem:[%s5 + $0x54] sm:$0xf]
        %v1018 = vld [vmem:[%s5 + $0x58] sm:$0xf]
        %v1019 = vld [vmem:[%s5 + $0x5c] sm:$0xf]
        %v1020 = vld [vmem:[%s5 + $0x60] sm:$0xf]
        %v1021 = vld [vmem:[%s5 + $0x64] sm:$0xf]
        %v1022 = vld [vmem:[%s5 + $0x68] sm:$0xf]
        %v1023 = vld [vmem:[%s5 + $0x6c] sm:$0xf]
        %v1024 = vld [vmem:[%s5 + $0x70] sm:$0xf]
        %v1025 = vld [vmem:[%s5 + $0x74] sm:$0xf]
        %v1026 = vld [vmem:[%s5 + $0x78] sm:$0xf]
        %v1027 = vld [vmem:[%s5 + $0x7c] sm:$0xf]
        %v1028 = vld [vmem:[%s6] sm:$0x1]
        %v1030 = vlaneseq
        %v1031 = vshrl.u32 %v1030, 7
        %v1032 = vsub.s32 0, %v1031
        %v1033 = vrot.slane %v1028, %v1032
        %v1067 = vunpack.c.l.b16 %v996
        %v1068 = vunpack.c.l.b16 %v997
        %v1069 = vunpack.c.l.b16 %v998
        %v1070 = vunpack.c.l.b16 %v999
        %v1071 = vunpack.c.l.b16 %v1000
        %v1072 = vunpack.c.l.b16 %v1001
        %v1073 = vunpack.c.l.b16 %v1002
        %v1074 = vunpack.c.l.b16 %v1003
        %v1075 = vunpack.c.l.b16 %v1004
        %v1076 = vunpack.c.l.b16 %v1005
        %v1077 = vunpack.c.l.b16 %v1006
        %v1078 = vunpack.c.l.b16 %v1007
        %v1079 = vunpack.c.l.b16 %v1008
        %v1080 = vunpack.c.l.b16 %v1009
        %v1081 = vunpack.c.l.b16 %v1010
        %v1082 = vunpack.c.l.b16 %v1011
        %v1083 = vunpack.c.l.b16 %v1012
        %v1084 = vunpack.c.l.b16 %v1013
        %v1085 = vunpack.c.l.b16 %v1014
        %v1086 = vunpack.c.l.b16 %v1015
        %v1087 = vunpack.c.l.b16 %v1016
        %v1088 = vunpack.c.l.b16 %v1017
        %v1089 = vunpack.c.l.b16 %v1018
        %v1090 = vunpack.c.l.b16 %v1019
        %v1091 = vunpack.c.l.b16 %v1020
        %v1092 = vunpack.c.l.b16 %v1021
        %v1093 = vunpack.c.l.b16 %v1022
        %v1094 = vunpack.c.l.b16 %v1023
        %v1095 = vunpack.c.l.b16 %v1024
        %v1096 = vunpack.c.l.b16 %v1025
        %v1097 = vunpack.c.l.b16 %v1026
        %v1098 = vunpack.c.l.b16 %v1027
        %v1099 = vpack.c.b16 %v1068, %v1067
        %v1100 = vpack.c.b16 %v1070, %v1069
        %v1101 = vpack.c.b16 %v1072, %v1071
        %v1102 = vpack.c.b16 %v1074, %v1073
        %v1103 = vpack.c.b16 %v1076, %v1075
        %v1104 = vpack.c.b16 %v1078, %v1077
        %v1105 = vpack.c.b16 %v1080, %v1079
        %v1106 = vpack.c.b16 %v1082, %v1081
        %v1107 = vpack.c.b16 %v1084, %v1083
        %v1108 = vpack.c.b16 %v1086, %v1085
        %v1109 = vpack.c.b16 %v1088, %v1087
        %v1110 = vpack.c.b16 %v1090, %v1089
        %v1111 = vpack.c.b16 %v1092, %v1091
        %v1112 = vpack.c.b16 %v1094, %v1093
        %v1113 = vpack.c.b16 %v1096, %v1095
        %v1114 = vpack.c.b16 %v1098, %v1097
        %1131 = vmatprep.subr.bf16.mxu0 0
        %1132 = vmatpush1.bf16.msra.mxu0 %v1106
        %1133 = vmatprep.subr.bf16.mxu0 0
        %1134 = vmatpush1.bf16.msra.mxu0 %v1105
        %1135 = vmatprep.subr.bf16.mxu0 0
        %1136 = vmatpush1.bf16.msra.mxu0 %v1104
        %1137 = vmatprep.subr.bf16.mxu0 0
        %1138 = vmatpush1.bf16.msra.mxu0 %v1103
        %1139 = vmatprep.subr.bf16.mxu0 0
        %1140 = vmatpush1.bf16.msra.mxu0 %v1102
        %1141 = vmatprep.subr.bf16.mxu0 0
        %1142 = vmatpush1.bf16.msra.mxu0 %v1101
        %1143 = vmatprep.subr.bf16.mxu0 0
        %1144 = vmatpush1.bf16.msra.mxu0 %v1100
        %1145 = vmatprep.subr.bf16.mxu0 0
        %1146 = vmatpush1.bf16.msra.mxu0 %v1099
        %1147 = vmatprep.subr.bf16.mxu0 0
        %1148 = vmatpush2.bf16.msra.mxu0 %v1114
        %1149 = vmatprep.subr.bf16.mxu0 0
        %1150 = vmatpush2.bf16.msra.mxu0 %v1113
        %1151 = vmatprep.subr.bf16.mxu0 0
        %1152 = vmatpush2.bf16.msra.mxu0 %v1112
        %1153 = vmatprep.subr.bf16.mxu0 0
        %1154 = vmatpush2.bf16.msra.mxu0 %v1111
        %1155 = vmatprep.subr.bf16.mxu0 0
        %1156 = vmatpush2.bf16.msra.mxu0 %v1110
        %1157 = vmatprep.subr.bf16.mxu0 0
        %1158 = vmatpush2.bf16.msra.mxu0 %v1109
        %1159 = vmatprep.subr.bf16.mxu0 0
        %1160 = vmatpush2.bf16.msra.mxu0 %v1108
        %1161 = vmatprep.subr.bf16.mxu0 0
        %1162 = vmatpush2.bf16.msra.mxu0 %v1107
        %1163 = vmatprep.mubr.bf16.mxu0 %v981
        %1164 = vmatmul.mubr.bf16.gmra.mxu0 %v980
        %v1165 = vpop.f32.mrf.mxu0
        %v1166 = vadd.f32 %v1033, %v1165
        %v1167 = vpop.f32.mrf.mxu0
        %v1168 = vpop.f32.mrf.mxu0
        %v1169 = vadd.f32 %v1033, %v1168
        %v1170 = vpop.f32.mrf.mxu0
        %1171 = vmatprep.mubr.bf16.mxu0 %v983
        %1172 = vmatmul.mubr.bf16.gmra.mxu0 %v982
        %v1173 = vpop.f32.mrf.mxu0
        %v1174 = vadd.f32 %v1033, %v1173
        %v1175 = vpop.f32.mrf.mxu0
        %v1176 = vpop.f32.mrf.mxu0
        %v1177 = vadd.f32 %v1033, %v1176
        %v1178 = vpop.f32.mrf.mxu0
        %1179 = vmatprep.mubr.bf16.mxu0 %v985
        %1180 = vmatmul.mubr.bf16.gmra.mxu0 %v984
        %v1181 = vpop.f32.mrf.mxu0
        %v1182 = vadd.f32 %v1033, %v1181
        %v1183 = vpop.f32.mrf.mxu0
        %v1184 = vpop.f32.mrf.mxu0
        %v1185 = vadd.f32 %v1033, %v1184
        %v1186 = vpop.f32.mrf.mxu0
        %1187 = vmatprep.mubr.bf16.mxu0 %v987
        %1188 = vmatmul.mubr.bf16.gmra.mxu0 %v986
        %v1189 = vpop.f32.mrf.mxu0
        %v1190 = vadd.f32 %v1033, %v1189
        %v1191 = vpop.f32.mrf.mxu0
        %v1192 = vpop.f32.mrf.mxu0
        %v1193 = vadd.f32 %v1033, %v1192
        %v1194 = vpop.f32.mrf.mxu0
        %1195 = vmatprep.mubr.bf16.mxu0 %v989
        %1196 = vmatmul.mubr.bf16.gmra.mxu0 %v988
        %v1197 = vpop.f32.mrf.mxu0
        %v1198 = vadd.f32 %v1033, %v1197
        %v1199 = vpop.f32.mrf.mxu0
        %v1200 = vpop.f32.mrf.mxu0
        %v1201 = vadd.f32 %v1033, %v1200
        %v1202 = vpop.f32.mrf.mxu0
        %1203 = vmatprep.mubr.bf16.mxu0 %v991
        %1204 = vmatmul.mubr.bf16.gmra.mxu0 %v990
        %v1205 = vpop.f32.mrf.mxu0
        %v1206 = vadd.f32 %v1033, %v1205
        %v1207 = vpop.f32.mrf.mxu0
        %v1208 = vpop.f32.mrf.mxu0
        %v1209 = vadd.f32 %v1033, %v1208
        %v1210 = vpop.f32.mrf.mxu0
        %1211 = vmatprep.mubr.bf16.mxu0 %v993
        %1212 = vmatmul.mubr.bf16.gmra.mxu0 %v992
        %v1213 = vpop.f32.mrf.mxu0
        %v1214 = vadd.f32 %v1033, %v1213
        %v1215 = vpop.f32.mrf.mxu0
        %v1216 = vpop.f32.mrf.mxu0
        %v1217 = vadd.f32 %v1033, %v1216
        %v1218 = vpop.f32.mrf.mxu0
        %1219 = vmatprep.mubr.bf16.mxu0 %v995
        %1220 = vmatmul.mubr.bf16.gmra.mxu0 %v994
        %v1221 = vpop.f32.mrf.mxu0
        %v1222 = vadd.f32 %v1033, %v1221
        %v1223 = vpop.f32.mrf.mxu0
        %v1224 = vpop.f32.mrf.mxu0
        %v1225 = vadd.f32 %v1033, %v1224
        %v1226 = vpop.f32.mrf.mxu0
        %1227 = vdwg.mxu0
        %v1228 = vtanh.pop %v1166
        %v1229 = vtanh.pop %v1169
        %v1230 = vtanh.pop %v1174
        %v1231 = vtanh.pop %v1177
        %v1232 = vtanh.pop %v1182
        %v1233 = vtanh.pop %v1185
        %v1234 = vtanh.pop %v1190
        %v1235 = vtanh.pop %v1193
        %v1236 = vtanh.pop %v1198
        %v1237 = vtanh.pop %v1201
        %v1238 = vtanh.pop %v1206
        %v1239 = vtanh.pop %v1209
        %v1240 = vtanh.pop %v1214
        %v1241 = vtanh.pop %v1217
        %v1242 = vtanh.pop %v1222
        %v1243 = vtanh.pop %v1225
        %vm1244 = vcmask 64512
        %1245 = vst.msk [vmem:[%s298] sm:$0xff] %vm1244, %v1228
        %1246 = vst.msk [vmem:[%s298 + $0x8] sm:$0xff] %vm1244, %v1229
        %1247 = vst.msk [vmem:[%s298 + $0x10] sm:$0xff] %vm1244, %v1230
        %1248 = vst.msk [vmem:[%s298 + $0x18] sm:$0xff] %vm1244, %v1231
        %1249 = vst.msk [vmem:[%s298 + $0x20] sm:$0xff] %vm1244, %v1232
        %1250 = vst.msk [vmem:[%s298 + $0x28] sm:$0xff] %vm1244, %v1233
        %1251 = vst.msk [vmem:[%s298 + $0x30] sm:$0xff] %vm1244, %v1234
        %1252 = vst.msk [vmem:[%s298 + $0x38] sm:$0xff] %vm1244, %v1235
        %1253 = vst.msk [vmem:[%s298 + $0x40] sm:$0xff] %vm1244, %v1236
        %1254 = vst.msk [vmem:[%s298 + $0x48] sm:$0xff] %vm1244, %v1237
        %1255 = vst.msk [vmem:[%s298 + $0x50] sm:$0xff] %vm1244, %v1238
        %1256 = vst.msk [vmem:[%s298 + $0x58] sm:$0xff] %vm1244, %v1239
        %1257 = vst.msk [vmem:[%s298 + $0x60] sm:$0xff] %vm1244, %v1240
        %1258 = vst.msk [vmem:[%s298 + $0x68] sm:$0xff] %vm1244, %v1241
        %1259 = vst.msk [vmem:[%s298 + $0x70] sm:$0xff] %vm1244, %v1242
        %1260 = vst.msk [vmem:[%s298 + $0x78] sm:$0xff] %vm1244, %v1243
        %s1261 = sand.u32 %s181, 1
        %s1262 = sand.u32 %s181, 1
        %s1263 = smul.addr %s1262, 128
        %s1264 = scalar_lea.vmem [#allocation4], %s1263
        // Predicated region
        $region53: #{tpu_custom_call.1} parent=47 // pred_check
          %p1265 = pneg %p191
        $region54: #{tpu_custom_call.1} parent=47 // pred_check_branch
          %1267 = sbr.rel (%p1265) target = $region56
        $region55: #{tpu_custom_call.1} parent=47 // pred_region
          %s1268 = smul.u32 16, %s21
          %s1269 = ssub.s32 25, %s1268
          %p1270 = scmp.lt.s32.totalorder %s1269, 16
          %s1271 = scalar_select %p1270, %s1269, 16
          %s1272 = smul.u32 128, %s1271
          %p1273 = scmp.ne.s32.totalorder 0, %s1272
          %s1274 = smul.addr %s1268, 8
          %s1275 = scalar_lea.vmem %s7, %s1274
          // Predicated region
          $region57: #{tpu_custom_call.1} parent=55 // pred_check
            %p1276 = pneg %p1273
          $region58: #{tpu_custom_call.1} parent=55 // pred_check_branch
            %1278 = sbr.rel (%p1276) target = $region60
          $region59: #{tpu_custom_call.1} parent=55 // pred_region
            // Predicated region
            $region61: #{tpu_custom_call.1} parent=59 // pred_check
              _
            $region62: #{tpu_custom_call.1} parent=59 // pred_check_branch
              %1280 = sbr.rel (0) target = $region64
            $region63: #{tpu_custom_call.1} parent=59 // pred_region
              // Predicated region
              $region83: #{tpu_custom_call.1} parent=63 // pred_check
                _
              $region84: #{tpu_custom_call.1} parent=63 // pred_check_branch
                %1360 = sbr.rel (0) target = $region86
              $region85: #{tpu_custom_call.1} parent=63 // pred_region
                %s1361 = sshrl.u32 %s1271, 4
                // While loop
                $region87: #{tpu_custom_call.1} parent=85 // loop_pre_header
                  _
                $region88: #{tpu_custom_call.1} parent=85 // loop_header
                  %s1363 = sphi 0, %s1365
                  %p1364 = scmp.ge.s32.totalorder %s1363, %s1361
                  %s1368 = sphi 0, %s1405
                  %s1369 = sphi %s1264, %s1408
                  %s1370 = sphi %s1275, %s1409
                $region89: #{tpu_custom_call.1} parent=85 // loop_header_branch
                  %1367 = sbr.rel (%p1364) target = $region93
                $region90: #{tpu_custom_call.1} parent=85 // loop_body
                  %v1371 = vld [vmem:[%s1369] sm:$0xff]
                  %1372 = vst [vmem:[%s1370] sm:$0xff] %v1371
                  %v1373 = vld [vmem:[%s1369 + $0x8] sm:$0xff]
                  %1374 = vst [vmem:[%s1370 + $0x8] sm:$0xff] %v1373
                  %v1375 = vld [vmem:[%s1369 + $0x10] sm:$0xff]
                  %1376 = vst [vmem:[%s1370 + $0x10] sm:$0xff] %v1375
                  %v1377 = vld [vmem:[%s1369 + $0x18] sm:$0xff]
                  %1378 = vst [vmem:[%s1370 + $0x18] sm:$0xff] %v1377
                  %v1379 = vld [vmem:[%s1369 + $0x20] sm:$0xff]
                  %1380 = vst [vmem:[%s1370 + $0x20] sm:$0xff] %v1379
                  %v1381 = vld [vmem:[%s1369 + $0x28] sm:$0xff]
                  %1382 = vst [vmem:[%s1370 + $0x28] sm:$0xff] %v1381
                  %v1383 = vld [vmem:[%s1369 + $0x30] sm:$0xff]
                  %1384 = vst [vmem:[%s1370 + $0x30] sm:$0xff] %v1383
                  %v1385 = vld [vmem:[%s1369 + $0x38] sm:$0xff]
                  %1386 = vst [vmem:[%s1370 + $0x38] sm:$0xff] %v1385
                  %v1387 = vld [vmem:[%s1369 + $0x40] sm:$0xff]
                  %1388 = vst [vmem:[%s1370 + $0x40] sm:$0xff] %v1387
                  %v1389 = vld [vmem:[%s1369 + $0x48] sm:$0xff]
                  %1390 = vst [vmem:[%s1370 + $0x48] sm:$0xff] %v1389
                  %v1391 = vld [vmem:[%s1369 + $0x50] sm:$0xff]
                  %1392 = vst [vmem:[%s1370 + $0x50] sm:$0xff] %v1391
                  %v1393 = vld [vmem:[%s1369 + $0x58] sm:$0xff]
                  %1394 = vst [vmem:[%s1370 + $0x58] sm:$0xff] %v1393
                  %v1395 = vld [vmem:[%s1369 + $0x60] sm:$0xff]
                  %1396 = vst [vmem:[%s1370 + $0x60] sm:$0xff] %v1395
                  %v1397 = vld [vmem:[%s1369 + $0x68] sm:$0xff]
                  %1398 = vst [vmem:[%s1370 + $0x68] sm:$0xff] %v1397
                  %v1399 = vld [vmem:[%s1369 + $0x70] sm:$0xff]
                  %1400 = vst [vmem:[%s1370 + $0x70] sm:$0xff] %v1399
                  %v1401 = vld [vmem:[%s1369 + $0x78] sm:$0xff]
                  %1402 = vst [vmem:[%s1370 + $0x78] sm:$0xff] %v1401
                  %s1403 = sadd.s32 1, %s1368
                  %p1404 = scmp.ge.s32.totalorder %s1403, %s1361
                  %s1405 = scalar_select %p1404, 0, %s1403
                  %s1406 = smul.u32 %s1405, 128
                  %s1407 = smul.u32 %s1405, 128
                  %s1408 = scalar_lea.vmem %s1264, %s1406 [#allocation4]
                  %s1409 = scalar_lea.vmem %s1275, %s1407
                $region91: #{tpu_custom_call.1} parent=85 // loop_footer
                  %s1365 = sadd.s32 %s1363, 1
                $region92: #{tpu_custom_call.1} parent=85 // loop_footer_branch
                  %1362 = sbr.rel target = $region88
                $region93: #{tpu_custom_call.1} parent=85 // loop_exit
                  _
                %s1410 = sshrl.u32 %s1271, 4
                %s1411 = sand.u32 %s1271, 15
                %s1412 = smul.u32 %s1410, 16
                %s1413 = smul.u32 8, %s1412
                %s1414 = scalar_lea.vmem %s1264, %s1413 [#allocation4]
                %s1415 = smul.u32 8, %s1412
                %s1416 = scalar_lea.vmem %s1275, %s1415
                // While loop
                $region94: #{tpu_custom_call.1} parent=85 // loop_pre_header
                  _
                $region95: #{tpu_custom_call.1} parent=85 // loop_header
                  %s1418 = sphi 0, %s1420
                  %p1419 = scmp.ge.s32.totalorder %s1418, %s1411
                  %s1423 = sphi 0, %s1430
                  %s1424 = sphi %s1414, %s1433
                  %s1425 = sphi %s1416, %s1434
                $region96: #{tpu_custom_call.1} parent=85 // loop_header_branch
                  %1422 = sbr.rel (%p1419) target = $region100
                $region97: #{tpu_custom_call.1} parent=85 // loop_body
                  %v1426 = vld [vmem:[%s1424] sm:$0xff]
                  %1427 = vst [vmem:[%s1425] sm:$0xff] %v1426
                  %s1428 = sadd.s32 1, %s1423
                  %p1429 = scmp.ge.s32.totalorder %s1428, %s1411
                  %s1430 = scalar_select %p1429, 0, %s1428
                  %s1431 = smul.u32 %s1430, 8
                  %s1432 = smul.u32 %s1430, 8
                  %s1433 = scalar_lea.vmem %s1414, %s1431 [#allocation4]
                  %s1434 = scalar_lea.vmem %s1416, %s1432
                $region98: #{tpu_custom_call.1} parent=85 // loop_footer
                  %s1420 = sadd.s32 %s1418, 1
                $region99: #{tpu_custom_call.1} parent=85 // loop_footer_branch
                  %1417 = sbr.rel target = $region95
                $region100: #{tpu_custom_call.1} parent=85 // loop_exit
                  _
              $region86: #{tpu_custom_call.1} parent=63 // pred_fallthru
                _
              // Predicated region
              $region101: #{tpu_custom_call.1} parent=63 // pred_check
                _
              $region102: #{tpu_custom_call.1} parent=63 // pred_check_branch
                %1436 = sbr.rel target = $region104
              $region103: #{tpu_custom_call.1} parent=63 // pred_region
                _
              $region104: #{tpu_custom_call.1} parent=63 // pred_fallthru
                _
            $region64: #{tpu_custom_call.1} parent=59 // pred_fallthru
              _
            // Predicated region
            $region65: #{tpu_custom_call.1} parent=59 // pred_check
              _
            $region66: #{tpu_custom_call.1} parent=59 // pred_check_branch
              %1282 = sbr.rel target = $region68
            $region67: #{tpu_custom_call.1} parent=59 // pred_region
              %s1284 = ssub.s32 256, 1
              %s1285 = sshrl.u32 %s1271, 4
              // While loop
              $region69: #{tpu_custom_call.1} parent=67 // loop_pre_header
                _
              $region70: #{tpu_custom_call.1} parent=67 // loop_header
                %s1287 = sphi 0, %s1289
                %p1288 = scmp.ge.s32.totalorder %s1287, %s1285
                %s1292 = sphi 0, %s1329
                %s1293 = sphi %s1264, %s1332
                %s1294 = sphi %s1275, %s1333
              $region71: #{tpu_custom_call.1} parent=67 // loop_header_branch
                %1291 = sbr.rel (%p1288) target = $region75
              $region72: #{tpu_custom_call.1} parent=67 // loop_body
                %v1295 = vld [vmem:[%s1293] sm:%s1284]
                %1296 = vst [vmem:[%s1294] sm:%s1284] %v1295
                %v1297 = vld [vmem:[%s1293 + $0x8] sm:%s1284]
                %1298 = vst [vmem:[%s1294 + $0x8] sm:%s1284] %v1297
                %v1299 = vld [vmem:[%s1293 + $0x10] sm:%s1284]
                %1300 = vst [vmem:[%s1294 + $0x10] sm:%s1284] %v1299
                %v1301 = vld [vmem:[%s1293 + $0x18] sm:%s1284]
                %1302 = vst [vmem:[%s1294 + $0x18] sm:%s1284] %v1301
                %v1303 = vld [vmem:[%s1293 + $0x20] sm:%s1284]
                %1304 = vst [vmem:[%s1294 + $0x20] sm:%s1284] %v1303
                %v1305 = vld [vmem:[%s1293 + $0x28] sm:%s1284]
                %1306 = vst [vmem:[%s1294 + $0x28] sm:%s1284] %v1305
                %v1307 = vld [vmem:[%s1293 + $0x30] sm:%s1284]
                %1308 = vst [vmem:[%s1294 + $0x30] sm:%s1284] %v1307
                %v1309 = vld [vmem:[%s1293 + $0x38] sm:%s1284]
                %1310 = vst [vmem:[%s1294 + $0x38] sm:%s1284] %v1309
                %v1311 = vld [vmem:[%s1293 + $0x40] sm:%s1284]
                %1312 = vst [vmem:[%s1294 + $0x40] sm:%s1284] %v1311
                %v1313 = vld [vmem:[%s1293 + $0x48] sm:%s1284]
                %1314 = vst [vmem:[%s1294 + $0x48] sm:%s1284] %v1313
                %v1315 = vld [vmem:[%s1293 + $0x50] sm:%s1284]
                %1316 = vst [vmem:[%s1294 + $0x50] sm:%s1284] %v1315
                %v1317 = vld [vmem:[%s1293 + $0x58] sm:%s1284]
                %1318 = vst [vmem:[%s1294 + $0x58] sm:%s1284] %v1317
                %v1319 = vld [vmem:[%s1293 + $0x60] sm:%s1284]
                %1320 = vst [vmem:[%s1294 + $0x60] sm:%s1284] %v1319
                %v1321 = vld [vmem:[%s1293 + $0x68] sm:%s1284]
                %1322 = vst [vmem:[%s1294 + $0x68] sm:%s1284] %v1321
                %v1323 = vld [vmem:[%s1293 + $0x70] sm:%s1284]
                %1324 = vst [vmem:[%s1294 + $0x70] sm:%s1284] %v1323
                %v1325 = vld [vmem:[%s1293 + $0x78] sm:%s1284]
                %1326 = vst [vmem:[%s1294 + $0x78] sm:%s1284] %v1325
                %s1327 = sadd.s32 1, %s1292
                %p1328 = scmp.ge.s32.totalorder %s1327, %s1285
                %s1329 = scalar_select %p1328, 0, %s1327
                %s1330 = smul.u32 %s1329, 128
                %s1331 = smul.u32 %s1329, 128
                %s1332 = scalar_lea.vmem %s1264, %s1330 [#allocation4]
                %s1333 = scalar_lea.vmem %s1275, %s1331
              $region73: #{tpu_custom_call.1} parent=67 // loop_footer
                %s1289 = sadd.s32 %s1287, 1
              $region74: #{tpu_custom_call.1} parent=67 // loop_footer_branch
                %1286 = sbr.rel target = $region70
              $region75: #{tpu_custom_call.1} parent=67 // loop_exit
                _
              %s1334 = sshrl.u32 %s1271, 4
              %s1335 = sand.u32 %s1271, 15
              %s1336 = smul.u32 %s1334, 16
              %s1337 = smul.u32 8, %s1336
              %s1338 = scalar_lea.vmem %s1264, %s1337 [#allocation4]
              %s1339 = smul.u32 8, %s1336
              %s1340 = scalar_lea.vmem %s1275, %s1339
              // While loop
              $region76: #{tpu_custom_call.1} parent=67 // loop_pre_header
                _
              $region77: #{tpu_custom_call.1} parent=67 // loop_header
                %s1342 = sphi 0, %s1344
                %p1343 = scmp.ge.s32.totalorder %s1342, %s1335
                %s1347 = sphi 0, %s1354
                %s1348 = sphi %s1338, %s1357
                %s1349 = sphi %s1340, %s1358
              $region78: #{tpu_custom_call.1} parent=67 // loop_header_branch
                %1346 = sbr.rel (%p1343) target = $region82
              $region79: #{tpu_custom_call.1} parent=67 // loop_body
                %v1350 = vld [vmem:[%s1348] sm:%s1284]
                %1351 = vst [vmem:[%s1349] sm:%s1284] %v1350
                %s1352 = sadd.s32 1, %s1347
                %p1353 = scmp.ge.s32.totalorder %s1352, %s1335
                %s1354 = scalar_select %p1353, 0, %s1352
                %s1355 = smul.u32 %s1354, 8
                %s1356 = smul.u32 %s1354, 8
                %s1357 = scalar_lea.vmem %s1338, %s1355 [#allocation4]
                %s1358 = scalar_lea.vmem %s1340, %s1356
              $region80: #{tpu_custom_call.1} parent=67 // loop_footer
                %s1344 = sadd.s32 %s1342, 1
              $region81: #{tpu_custom_call.1} parent=67 // loop_footer_branch
                %1341 = sbr.rel target = $region77
              $region82: #{tpu_custom_call.1} parent=67 // loop_exit
                _
            $region68: #{tpu_custom_call.1} parent=59 // pred_fallthru
              _
          $region60: #{tpu_custom_call.1} parent=55 // pred_fallthru
            _
          %1437 = vnop
        $region56: #{tpu_custom_call.1} parent=47 // pred_fallthru
          _
      $region48: #{tpu_custom_call.1} parent=5 // pred_fallthru
        _
      %p1438 = scmp.le.s32.totalorder 2, %s16
      // Predicated region
      $region105: #{tpu_custom_call.1} parent=5 // pred_check
        %p1439 = pneg %p1438
      $region106: #{tpu_custom_call.1} parent=5 // pred_check_branch
        %1441 = sbr.rel (%p1439) target = $region108
      $region107: #{tpu_custom_call.1} parent=5 // pred_region
        %s1442 = ssub.s32 %s16, 2
        // Predicated region
        $region109: #{tpu_custom_call.1} parent=107 // pred_check
          %p1443 = pneg %p197
        $region110: #{tpu_custom_call.1} parent=107 // pred_check_branch
          %1445 = sbr.rel (%p1443) target = $region112
        $region111: #{tpu_custom_call.1} parent=107 // pred_region
          %s1446 = sand.u32 %s182, 1
          %s1447 = sand.u32 %s182, 1
          %s1448 = smul.addr %s1447, 128
          %s1449 = scalar_lea.vmem [#allocation4], %s1448
        $region112: #{tpu_custom_call.1} parent=107 // pred_fallthru
          _
      $region108: #{tpu_custom_call.1} parent=5 // pred_fallthru
        _
    $region6: #{tpu_custom_call.1} parent=1 // loop_footer
      %s20 = sadd.s32 1, %s16
    $region7: #{tpu_custom_call.1} parent=1 // loop_footer_branch
      %15 = sbr.rel target = $region3
    $region8: #{tpu_custom_call.1} parent=1 // loop_exit
      _
    %1450 = vsyncpa [#allocation3], 1
    %s1451 = scalar_lea.sflag [#allocation3], 1
    %1452 = vsyncpa %s1451, 1

</llo_original>
